<compile_context>
chip_gen: v6e
topology: v6e:2x2x1
jax: 0.10.0
libtpu: 0.0.40
codegen_flags: <defaults>
</compile_context>

<pallas_src>
import jax
import jax.numpy as jnp
import numpy as np
from jax.experimental import pallas as pl
from jax.experimental.pallas import tpu as pltpu  # noqa: F401  (TPU backend)

# ----------------------------- sizes ----------------------------------------
B = 8          # batch
T = 8          # sequence length
E = 32         # embed_dim
H = 32         # hidden_dim
C = 6          # number of output classes (output_vocab_size)
IN_VOCAB = 50  # input_vocab_size


# --------------------- fused GRU + attention + classifier kernel -------------
def att_model_kernel(x_ref,       # [T, B, E]   raw token embeddings (time-major)
                     mask_ref,    # [T*B, 1]    pad mask, (t, b)-major
                     wxh_ref,     # [E, 3H]     fused input->gate weights (r|z|n)
                     whh_ref,     # [H, 3H]     fused hidden->gate weights (r|z|n)
                     bias_ref,    # [2, 3H]     row0: (bxr+bhr | bxz+bhz | bxn)
                                  #             row1: (0 | 0 | bhn)
                     attcls_ref,  # [H, H+C]    cols [0:H)=attend.T, [H:H+C)=cls.T
                     wcbc_ref,    # [H+1, 2]    rows [0:H)=wc, row H = bc
                     out_ref):    # [C, B, 2]   log-softmax outputs
    t_len, b_sz, e_dim = x_ref.shape
    h_dim = whh_ref.shape[0]
    n_cls = attcls_ref.shape[1] - h_dim

    # tanh(embed(seq)) for every step, flattened to (t, b)-major rows.
    x_flat = jnp.tanh(x_ref[...]).reshape(t_len * b_sz, e_dim)          # [T*B, E]

    bias_in = bias_ref[0:1, :]                                          # [1, 3H]
    bias_h = bias_ref[1:2, :]                                           # [1, 3H]

    # Input-side GRU projections for ALL T steps: ONE [T*B, E] @ [E, 3H] matmul.
    gi_all = jnp.dot(x_flat, wxh_ref[...],
                     preferred_element_type=jnp.float32) + bias_in      # [T*B, 3H]
    gi_rz = gi_all[:, :2 * h_dim]                                       # [T*B, 2H]
    gi_n = gi_all[:, 2 * h_dim:]                                        # [T*B, H]

    # Recurrent part: statically unrolled over T, ONE fused hidden matmul/step.
    whh = whh_ref[...]
    h = jnp.zeros((b_sz, h_dim), jnp.float32)
    hs = []
    for t in range(t_len):
        lo = t * b_sz
        gh = jnp.dot(h, whh, preferred_element_type=jnp.float32) + bias_h  # [B, 3H]
        rz = jax.nn.sigmoid(gi_rz[lo:lo + b_sz, :] + gh[:, :2 * h_dim])    # [B, 2H]
        r = rz[:, :h_dim]
        z = rz[:, h_dim:]
        n = jnp.tanh(gi_n[lo:lo + b_sz, :] + r * gh[:, 2 * h_dim:])
        h = (1.0 - z) * n + z * h
        hs.append(h)

    sr_flat = jnp.concatenate(hs, axis=0)             # [T*B, H], (t, b)-major
    sr_3d = sr_flat.reshape(t_len, b_sz, h_dim)       # [T, B, H]

    # Attention vectors for every class at once: tanh(tanh(cls) @ attend),
    # kept transposed so the score matmul needs no transposed operands.
    attend_t = attcls_ref[:, :h_dim]                  # [H, H] (= attend.T)
    cls_t = attcls_ref[:, h_dim:h_dim + n_cls]        # [H, C]
    attn_t = jnp.tanh(jnp.dot(attend_t, jnp.tanh(cls_t),
                              preferred_element_type=jnp.float32))      # [H, C]

    # Scores for all (t, b, c) in one MXU matmul; multiplicative pad mask + tanh.
    scores = jnp.dot(sr_flat, attn_t,
                     preferred_element_type=jnp.float32)                # [T*B, C]
    w_all = jnp.tanh(scores * mask_ref[...]).reshape(t_len, b_sz, n_cls)

    # Per-class context (tiny VPU work, C = 6 unrolled), stacked into ONE block.
    ctxs = []
    for c in range(n_cls):
        w_c = w_all[:, :, c:c + 1]                    # [T, B, 1]
        ctxs.append(jnp.sum(w_c * sr_3d, axis=0))     # [B, H] leading-dim reduce
    ctx_all = jnp.concatenate(ctxs, axis=0)           # [C*B, H]

    # Single classifier matmul + single log-softmax + single full-block store.
    wc = wcbc_ref[:h_dim, :]                          # [H, 2]
    bc = wcbc_ref[h_dim:h_dim + 1, :]                 # [1, 2]
    logits = jnp.dot(jnp.tanh(ctx_all), wc,
                     preferred_element_type=jnp.float32) + bc           # [C*B, 2]
    m = jnp.max(logits, axis=-1, keepdims=True)
    zc = logits - m
    lse = jnp.log(jnp.sum(jnp.exp(zc), axis=-1, keepdims=True))
    out_ref[...] = (zc - lse).reshape(n_cls, b_sz, 2)


# ----------------------------- full forward ----------------------------------
def att_model_forward(seq, classes, params):
    """seq: [B, T] int32 token ids; classes: [C] int32 class ids -> [C, B, 2]."""
    b_sz, t_len = seq.shape
    seq_t = seq.T                                               # [T, B] (tiny ints)
    x_tbe = params["embed"][seq_t]                              # [T, B, E] gather glue
    pad_mask = (seq_t > 0).astype(jnp.float32).reshape(t_len * b_sz, 1)
    cls_t = params["embed_class"][classes].T                    # [H, C] gather glue
    n_cls = cls_t.shape[1]

    # Fused / packed parameters (weight prep only; done in the wrapper).
    wxh = jnp.concatenate([params["wxr"], params["wxz"], params["wxn"]], axis=1)
    whh = jnp.concatenate([params["whr"], params["whz"], params["whn"]], axis=1)
    bias_in = jnp.concatenate([params["bxr"] + params["bhr"],
                               params["bxz"] + params["bhz"],
                               params["bxn"]], axis=1)          # [1, 3H]
    bias_h = jnp.concatenate([jnp.zeros_like(params["bhn"]),
                              jnp.zeros_like(params["bhn"]),
                              params["bhn"]], axis=1)           # [1, 3H]
    bias_pack = jnp.concatenate([bias_in, bias_h], axis=0)      # [2, 3H]
    attcls = jnp.concatenate([params["attend"].T, cls_t], axis=1)   # [H, H+C]
    wcbc = jnp.concatenate([params["wc"], params["bc"]], axis=0)    # [H+1, 2]

    return pl.pallas_call(
        att_model_kernel,
        out_shape=jax.ShapeDtypeStruct((n_cls, b_sz, 2), jnp.float32),
    )(x_tbe, pad_mask, wxh, whh, bias_pack, attcls, wcbc)


# ----------------------------- pure-JAX reference ----------------------------
def reference_forward(seq, classes, params):
    pad_mask = (seq > 0).astype(jnp.float32)                    # [B, T]
    emb = jnp.tanh(params["embed"][seq])                        # [B, T, E]

    def step(h, x):
        r = jax.nn.sigmoid(x @ params["wxr"] + params["bxr"][0]
                           + h @ params["whr"] + params["bhr"][0])
        z = jax.nn.sigmoid(x @ params["wxz"] + params["bxz"][0]
                           + h @ params["whz"] + params["bhz"][0])
        n = jnp.tanh(x @ params["wxn"] + params["bxn"][0]
                     + r * (h @ params["whn"] + params["bhn"][0]))
        hn = (1.0 - z) * n + z * h
        return hn, hn

    h0 = jnp.zeros((seq.shape[0], H), jnp.float32)
    _, hs = jax.lax.scan(step, h0, jnp.transpose(emb, (1, 0, 2)))
    seq_repr = jnp.transpose(hs, (1, 0, 2))                     # [B, T, H]

    outs = []
    for c in np.asarray(classes):
        ce = params["embed_class"][c][None, :]
        attn = jnp.tanh(jnp.tanh(ce) @ params["attend"])        # [1, H]
        scores = jnp.einsum("bth,h->bt", seq_repr, attn[0]) * pad_mask
        w = jnp.tanh(scores)
        ctx = jnp.einsum("bt,bth->bh", w, seq_repr)
        logits = jnp.tanh(ctx) @ params["wc"] + params["bc"][0]
        outs.append(jax.nn.log_softmax(logits, axis=-1))
    return jnp.stack(outs)


# ----------------------------- main ------------------------------------------
if __name__ == "__main__":
    key = jax.random.PRNGKey(0)
    keys = iter(jax.random.split(key, 20))

    def rnd(shape):
        return 0.1 * jax.random.normal(next(keys), shape, jnp.float32)

    params = {
        "embed":       rnd((IN_VOCAB, E)),
        "embed_class": rnd((C, H)),
        # GRUCell weights, per gate / per input, gate order (r, z, n)
        "wxr": rnd((E, H)), "wxz": rnd((E, H)), "wxn": rnd((E, H)),
        "whr": rnd((H, H)), "whz": rnd((H, H)), "whn": rnd((H, H)),
        "bxr": rnd((1, H)), "bxz": rnd((1, H)), "bxn": rnd((1, H)),
        "bhr": rnd((1, H)), "bhz": rnd((1, H)), "bhn": rnd((1, H)),
        # attend ~ N(0, 0.1) as in the torch init
        "attend": rnd((H, H)),
        # classifier Linear(H, 2)
        "wc": rnd((H, 2)), "bc": rnd((1, 2)),
    }

    # token ids; force trailing zeros so the pad mask is exercised
    seq = jax.random.randint(next(keys), (B, T), 0, IN_VOCAB, dtype=jnp.int32)
    seq = seq.at[:, T - 2:].set(0)
    classes = jnp.arange(C, dtype=jnp.int32)

    out = jax.jit(att_model_forward)(seq, classes, params)
    out = jax.block_until_ready(out)

    ref = jax.block_until_ready(reference_forward(seq, classes, params))
    assert out.shape == (C, B, 2), out.shape
    np.testing.assert_allclose(np.asarray(out), np.asarray(ref), atol=2e-2, rtol=2e-2)

    print("KERNEL_OK")
</pallas_src>

<mosaic_0001>
module attributes {stable_mosaic.version = 11 : i64} {
  func.func @att_model_kernel(%arg0: memref<8x8x32xf32, #tpu.memory_space<vmem>>, %arg1: memref<64x1xf32, #tpu.memory_space<vmem>>, %arg2: memref<32x96xf32, #tpu.memory_space<vmem>>, %arg3: memref<32x96xf32, #tpu.memory_space<vmem>>, %arg4: memref<2x96xf32, #tpu.memory_space<vmem>>, %arg5: memref<32x38xf32, #tpu.memory_space<vmem>>, %arg6: memref<33x2xf32, #tpu.memory_space<vmem>>, %arg7: memref<6x8x2xf32, #tpu.memory_space<vmem>>) attributes {dimension_semantics = [], scalar_prefetch = 0 : i64, scratch_operands = 0 : i64, tpu.core_type = #tpu.core_type<tc>} {
    %c0 = arith.constant 0 : index
    %c0_0 = arith.constant 0 : index
    %c0_1 = arith.constant 0 : index
    %0 = vector.load %arg0[%c0, %c0_0, %c0_1] : memref<8x8x32xf32, #tpu.memory_space<vmem>>, vector<8x8x32xf32>
    %1 = math.tanh %0 : vector<8x8x32xf32>
    %2 = vector.shape_cast %1 : vector<8x8x32xf32> to vector<64x32xf32>
    %c0_2 = arith.constant 0 : index
    %c0_3 = arith.constant 0 : index
    %3 = vector.load %arg4[%c0_2, %c0_3] : memref<2x96xf32, #tpu.memory_space<vmem>>, vector<1x96xf32>
    %c1 = arith.constant 1 : index
    %c0_4 = arith.constant 0 : index
    %4 = vector.load %arg4[%c1, %c0_4] : memref<2x96xf32, #tpu.memory_space<vmem>>, vector<1x96xf32>
    %c0_5 = arith.constant 0 : index
    %c0_6 = arith.constant 0 : index
    %5 = vector.load %arg2[%c0_5, %c0_6] : memref<32x96xf32, #tpu.memory_space<vmem>>, vector<32x96xf32>
    %cst = arith.constant dense<0.000000e+00> : vector<64x96xf32>
    %6 = tpu.matmul %2, %5, %cst {dimension_numbers = #tpu.dot_dimension_numbers<[1], [0], [0], [1], [0, 0, 1, 1], [], []>} : vector<64x32xf32>, vector<32x96xf32>, vector<64x96xf32> -> vector<64x96xf32>
    %7 = vector.broadcast %3 : vector<1x96xf32> to vector<64x96xf32>
    %8 = arith.addf %6, %7 : vector<64x96xf32>
    %9 = vector.extract_strided_slice %8 {offsets = [0, 0], sizes = [64, 64], strides = [1, 1]} : vector<64x96xf32> to vector<64x64xf32>
    %10 = vector.extract_strided_slice %8 {offsets = [0, 64], sizes = [64, 32], strides = [1, 1]} : vector<64x96xf32> to vector<64x32xf32>
    %c0_7 = arith.constant 0 : index
    %c0_8 = arith.constant 0 : index
    %11 = vector.load %arg3[%c0_7, %c0_8] : memref<32x96xf32, #tpu.memory_space<vmem>>, vector<32x96xf32>
    %cst_9 = arith.constant 0.000000e+00 : f32
    %12 = vector.broadcast %cst_9 : f32 to vector<8x32xf32>
    %cst_10 = arith.constant dense<0.000000e+00> : vector<8x96xf32>
    %13 = tpu.matmul %12, %11, %cst_10 {dimension_numbers = #tpu.dot_dimension_numbers<[1], [0], [0], [1], [0, 0, 1, 1], [], []>} : vector<8x32xf32>, vector<32x96xf32>, vector<8x96xf32> -> vector<8x96xf32>
    %14 = vector.broadcast %4 : vector<1x96xf32> to vector<8x96xf32>
    %15 = arith.addf %13, %14 : vector<8x96xf32>
    %16 = vector.extract_strided_slice %9 {offsets = [0, 0], sizes = [8, 64], strides = [1, 1]} : vector<64x64xf32> to vector<8x64xf32>
    %17 = vector.extract_strided_slice %15 {offsets = [0, 0], sizes = [8, 64], strides = [1, 1]} : vector<8x96xf32> to vector<8x64xf32>
    %18 = arith.addf %16, %17 : vector<8x64xf32>
    %19 = arith.negf %18 : vector<8x64xf32>
    %20 = math.exp %19 : vector<8x64xf32>
    %cst_11 = arith.constant 1.000000e+00 : f32
    %21 = vector.broadcast %cst_11 : f32 to vector<8x64xf32>
    %22 = arith.addf %21, %20 : vector<8x64xf32>
    %23 = arith.divf %21, %22 : vector<8x64xf32>
    %24 = vector.extract_strided_slice %23 {offsets = [0, 0], sizes = [8, 32], strides = [1, 1]} : vector<8x64xf32> to vector<8x32xf32>
    %25 = vector.extract_strided_slice %23 {offsets = [0, 32], sizes = [8, 32], strides = [1, 1]} : vector<8x64xf32> to vector<8x32xf32>
    %26 = vector.extract_strided_slice %10 {offsets = [0, 0], sizes = [8, 32], strides = [1, 1]} : vector<64x32xf32> to vector<8x32xf32>
    %27 = vector.extract_strided_slice %15 {offsets = [0, 64], sizes = [8, 32], strides = [1, 1]} : vector<8x96xf32> to vector<8x32xf32>
    %28 = arith.mulf %24, %27 : vector<8x32xf32>
    %29 = arith.addf %26, %28 : vector<8x32xf32>
    %30 = math.tanh %29 : vector<8x32xf32>
    %cst_12 = arith.constant 1.000000e+00 : f32
    %31 = vector.broadcast %cst_12 : f32 to vector<8x32xf32>
    %32 = arith.subf %31, %25 : vector<8x32xf32>
    %33 = arith.mulf %32, %30 : vector<8x32xf32>
    %34 = arith.mulf %25, %12 : vector<8x32xf32>
    %35 = arith.addf %33, %34 : vector<8x32xf32>
    %cst_13 = arith.constant dense<0.000000e+00> : vector<8x96xf32>
    %36 = tpu.matmul %35, %11, %cst_13 {dimension_numbers = #tpu.dot_dimension_numbers<[1], [0], [0], [1], [0, 0, 1, 1], [], []>} : vector<8x32xf32>, vector<32x96xf32>, vector<8x96xf32> -> vector<8x96xf32>
    %37 = vector.broadcast %4 : vector<1x96xf32> to vector<8x96xf32>
    %38 = arith.addf %36, %37 : vector<8x96xf32>
    %39 = vector.extract_strided_slice %9 {offsets = [8, 0], sizes = [8, 64], strides = [1, 1]} : vector<64x64xf32> to vector<8x64xf32>
    %40 = vector.extract_strided_slice %38 {offsets = [0, 0], sizes = [8, 64], strides = [1, 1]} : vector<8x96xf32> to vector<8x64xf32>
    %41 = arith.addf %39, %40 : vector<8x64xf32>
    %42 = arith.negf %41 : vector<8x64xf32>
    %43 = math.exp %42 : vector<8x64xf32>
    %cst_14 = arith.constant 1.000000e+00 : f32
    %44 = vector.broadcast %cst_14 : f32 to vector<8x64xf32>
    %45 = arith.addf %44, %43 : vector<8x64xf32>
    %46 = arith.divf %44, %45 : vector<8x64xf32>
    %47 = vector.extract_strided_slice %46 {offsets = [0, 0], sizes = [8, 32], strides = [1, 1]} : vector<8x64xf32> to vector<8x32xf32>
    %48 = vector.extract_strided_slice %46 {offsets = [0, 32], sizes = [8, 32], strides = [1, 1]} : vector<8x64xf32> to vector<8x32xf32>
    %49 = vector.extract_strided_slice %10 {offsets = [8, 0], sizes = [8, 32], strides = [1, 1]} : vector<64x32xf32> to vector<8x32xf32>
    %50 = vector.extract_strided_slice %38 {offsets = [0, 64], sizes = [8, 32], strides = [1, 1]} : vector<8x96xf32> to vector<8x32xf32>
    %51 = arith.mulf %47, %50 : vector<8x32xf32>
    %52 = arith.addf %49, %51 : vector<8x32xf32>
    %53 = math.tanh %52 : vector<8x32xf32>
    %cst_15 = arith.constant 1.000000e+00 : f32
    %54 = vector.broadcast %cst_15 : f32 to vector<8x32xf32>
    %55 = arith.subf %54, %48 : vector<8x32xf32>
    %56 = arith.mulf %55, %53 : vector<8x32xf32>
    %57 = arith.mulf %48, %35 : vector<8x32xf32>
    %58 = arith.addf %56, %57 : vector<8x32xf32>
    %cst_16 = arith.constant dense<0.000000e+00> : vector<8x96xf32>
    %59 = tpu.matmul %58, %11, %cst_16 {dimension_numbers = #tpu.dot_dimension_numbers<[1], [0], [0], [1], [0, 0, 1, 1], [], []>} : vector<8x32xf32>, vector<32x96xf32>, vector<8x96xf32> -> vector<8x96xf32>
    %60 = vector.broadcast %4 : vector<1x96xf32> to vector<8x96xf32>
    %61 = arith.addf %59, %60 : vector<8x96xf32>
    %62 = vector.extract_strided_slice %9 {offsets = [16, 0], sizes = [8, 64], strides = [1, 1]} : vector<64x64xf32> to vector<8x64xf32>
    %63 = vector.extract_strided_slice %61 {offsets = [0, 0], sizes = [8, 64], strides = [1, 1]} : vector<8x96xf32> to vector<8x64xf32>
    %64 = arith.addf %62, %63 : vector<8x64xf32>
    %65 = arith.negf %64 : vector<8x64xf32>
    %66 = math.exp %65 : vector<8x64xf32>
    %cst_17 = arith.constant 1.000000e+00 : f32
    %67 = vector.broadcast %cst_17 : f32 to vector<8x64xf32>
    %68 = arith.addf %67, %66 : vector<8x64xf32>
    %69 = arith.divf %67, %68 : vector<8x64xf32>
    %70 = vector.extract_strided_slice %69 {offsets = [0, 0], sizes = [8, 32], strides = [1, 1]} : vector<8x64xf32> to vector<8x32xf32>
    %71 = vector.extract_strided_slice %69 {offsets = [0, 32], sizes = [8, 32], strides = [1, 1]} : vector<8x64xf32> to vector<8x32xf32>
    %72 = vector.extract_strided_slice %10 {offsets = [16, 0], sizes = [8, 32], strides = [1, 1]} : vector<64x32xf32> to vector<8x32xf32>
    %73 = vector.extract_strided_slice %61 {offsets = [0, 64], sizes = [8, 32], strides = [1, 1]} : vector<8x96xf32> to vector<8x32xf32>
    %74 = arith.mulf %70, %73 : vector<8x32xf32>
    %75 = arith.addf %72, %74 : vector<8x32xf32>
    %76 = math.tanh %75 : vector<8x32xf32>
    %cst_18 = arith.constant 1.000000e+00 : f32
    %77 = vector.broadcast %cst_18 : f32 to vector<8x32xf32>
    %78 = arith.subf %77, %71 : vector<8x32xf32>
    %79 = arith.mulf %78, %76 : vector<8x32xf32>
    %80 = arith.mulf %71, %58 : vector<8x32xf32>
    %81 = arith.addf %79, %80 : vector<8x32xf32>
    %cst_19 = arith.constant dense<0.000000e+00> : vector<8x96xf32>
    %82 = tpu.matmul %81, %11, %cst_19 {dimension_numbers = #tpu.dot_dimension_numbers<[1], [0], [0], [1], [0, 0, 1, 1], [], []>} : vector<8x32xf32>, vector<32x96xf32>, vector<8x96xf32> -> vector<8x96xf32>
    %83 = vector.broadcast %4 : vector<1x96xf32> to vector<8x96xf32>
    %84 = arith.addf %82, %83 : vector<8x96xf32>
    %85 = vector.extract_strided_slice %9 {offsets = [24, 0], sizes = [8, 64], strides = [1, 1]} : vector<64x64xf32> to vector<8x64xf32>
    %86 = vector.extract_strided_slice %84 {offsets = [0, 0], sizes = [8, 64], strides = [1, 1]} : vector<8x96xf32> to vector<8x64xf32>
    %87 = arith.addf %85, %86 : vector<8x64xf32>
    %88 = arith.negf %87 : vector<8x64xf32>
    %89 = math.exp %88 : vector<8x64xf32>
    %cst_20 = arith.constant 1.000000e+00 : f32
    %90 = vector.broadcast %cst_20 : f32 to vector<8x64xf32>
    %91 = arith.addf %90, %89 : vector<8x64xf32>
    %92 = arith.divf %90, %91 : vector<8x64xf32>
    %93 = vector.extract_strided_slice %92 {offsets = [0, 0], sizes = [8, 32], strides = [1, 1]} : vector<8x64xf32> to vector<8x32xf32>
    %94 = vector.extract_strided_slice %92 {offsets = [0, 32], sizes = [8, 32], strides = [1, 1]} : vector<8x64xf32> to vector<8x32xf32>
    %95 = vector.extract_strided_slice %10 {offsets = [24, 0], sizes = [8, 32], strides = [1, 1]} : vector<64x32xf32> to vector<8x32xf32>
    %96 = vector.extract_strided_slice %84 {offsets = [0, 64], sizes = [8, 32], strides = [1, 1]} : vector<8x96xf32> to vector<8x32xf32>
    %97 = arith.mulf %93, %96 : vector<8x32xf32>
    %98 = arith.addf %95, %97 : vector<8x32xf32>
    %99 = math.tanh %98 : vector<8x32xf32>
    %cst_21 = arith.constant 1.000000e+00 : f32
    %100 = vector.broadcast %cst_21 : f32 to vector<8x32xf32>
    %101 = arith.subf %100, %94 : vector<8x32xf32>
    %102 = arith.mulf %101, %99 : vector<8x32xf32>
    %103 = arith.mulf %94, %81 : vector<8x32xf32>
    %104 = arith.addf %102, %103 : vector<8x32xf32>
    %cst_22 = arith.constant dense<0.000000e+00> : vector<8x96xf32>
    %105 = tpu.matmul %104, %11, %cst_22 {dimension_numbers = #tpu.dot_dimension_numbers<[1], [0], [0], [1], [0, 0, 1, 1], [], []>} : vector<8x32xf32>, vector<32x96xf32>, vector<8x96xf32> -> vector<8x96xf32>
    %106 = vector.broadcast %4 : vector<1x96xf32> to vector<8x96xf32>
    %107 = arith.addf %105, %106 : vector<8x96xf32>
    %108 = vector.extract_strided_slice %9 {offsets = [32, 0], sizes = [8, 64], strides = [1, 1]} : vector<64x64xf32> to vector<8x64xf32>
    %109 = vector.extract_strided_slice %107 {offsets = [0, 0], sizes = [8, 64], strides = [1, 1]} : vector<8x96xf32> to vector<8x64xf32>
    %110 = arith.addf %108, %109 : vector<8x64xf32>
    %111 = arith.negf %110 : vector<8x64xf32>
    %112 = math.exp %111 : vector<8x64xf32>
    %cst_23 = arith.constant 1.000000e+00 : f32
    %113 = vector.broadcast %cst_23 : f32 to vector<8x64xf32>
    %114 = arith.addf %113, %112 : vector<8x64xf32>
    %115 = arith.divf %113, %114 : vector<8x64xf32>
    %116 = vector.extract_strided_slice %115 {offsets = [0, 0], sizes = [8, 32], strides = [1, 1]} : vector<8x64xf32> to vector<8x32xf32>
    %117 = vector.extract_strided_slice %115 {offsets = [0, 32], sizes = [8, 32], strides = [1, 1]} : vector<8x64xf32> to vector<8x32xf32>
    %118 = vector.extract_strided_slice %10 {offsets = [32, 0], sizes = [8, 32], strides = [1, 1]} : vector<64x32xf32> to vector<8x32xf32>
    %119 = vector.extract_strided_slice %107 {offsets = [0, 64], sizes = [8, 32], strides = [1, 1]} : vector<8x96xf32> to vector<8x32xf32>
    %120 = arith.mulf %116, %119 : vector<8x32xf32>
    %121 = arith.addf %118, %120 : vector<8x32xf32>
    %122 = math.tanh %121 : vector<8x32xf32>
    %cst_24 = arith.constant 1.000000e+00 : f32
    %123 = vector.broadcast %cst_24 : f32 to vector<8x32xf32>
    %124 = arith.subf %123, %117 : vector<8x32xf32>
    %125 = arith.mulf %124, %122 : vector<8x32xf32>
    %126 = arith.mulf %117, %104 : vector<8x32xf32>
    %127 = arith.addf %125, %126 : vector<8x32xf32>
    %cst_25 = arith.constant dense<0.000000e+00> : vector<8x96xf32>
    %128 = tpu.matmul %127, %11, %cst_25 {dimension_numbers = #tpu.dot_dimension_numbers<[1], [0], [0], [1], [0, 0, 1, 1], [], []>} : vector<8x32xf32>, vector<32x96xf32>, vector<8x96xf32> -> vector<8x96xf32>
    %129 = vector.broadcast %4 : vector<1x96xf32> to vector<8x96xf32>
    %130 = arith.addf %128, %129 : vector<8x96xf32>
    %131 = vector.extract_strided_slice %9 {offsets = [40, 0], sizes = [8, 64], strides = [1, 1]} : vector<64x64xf32> to vector<8x64xf32>
    %132 = vector.extract_strided_slice %130 {offsets = [0, 0], sizes = [8, 64], strides = [1, 1]} : vector<8x96xf32> to vector<8x64xf32>
    %133 = arith.addf %131, %132 : vector<8x64xf32>
    %134 = arith.negf %133 : vector<8x64xf32>
    %135 = math.exp %134 : vector<8x64xf32>
    %cst_26 = arith.constant 1.000000e+00 : f32
    %136 = vector.broadcast %cst_26 : f32 to vector<8x64xf32>
    %137 = arith.addf %136, %135 : vector<8x64xf32>
    %138 = arith.divf %136, %137 : vector<8x64xf32>
    %139 = vector.extract_strided_slice %138 {offsets = [0, 0], sizes = [8, 32], strides = [1, 1]} : vector<8x64xf32> to vector<8x32xf32>
    %140 = vector.extract_strided_slice %138 {offsets = [0, 32], sizes = [8, 32], strides = [1, 1]} : vector<8x64xf32> to vector<8x32xf32>
    %141 = vector.extract_strided_slice %10 {offsets = [40, 0], sizes = [8, 32], strides = [1, 1]} : vector<64x32xf32> to vector<8x32xf32>
    %142 = vector.extract_strided_slice %130 {offsets = [0, 64], sizes = [8, 32], strides = [1, 1]} : vector<8x96xf32> to vector<8x32xf32>
    %143 = arith.mulf %139, %142 : vector<8x32xf32>
    %144 = arith.addf %141, %143 : vector<8x32xf32>
    %145 = math.tanh %144 : vector<8x32xf32>
    %cst_27 = arith.constant 1.000000e+00 : f32
    %146 = vector.broadcast %cst_27 : f32 to vector<8x32xf32>
    %147 = arith.subf %146, %140 : vector<8x32xf32>
    %148 = arith.mulf %147, %145 : vector<8x32xf32>
    %149 = arith.mulf %140, %127 : vector<8x32xf32>
    %150 = arith.addf %148, %149 : vector<8x32xf32>
    %cst_28 = arith.constant dense<0.000000e+00> : vector<8x96xf32>
    %151 = tpu.matmul %150, %11, %cst_28 {dimension_numbers = #tpu.dot_dimension_numbers<[1], [0], [0], [1], [0, 0, 1, 1], [], []>} : vector<8x32xf32>, vector<32x96xf32>, vector<8x96xf32> -> vector<8x96xf32>
    %152 = vector.broadcast %4 : vector<1x96xf32> to vector<8x96xf32>
    %153 = arith.addf %151, %152 : vector<8x96xf32>
    %154 = vector.extract_strided_slice %9 {offsets = [48, 0], sizes = [8, 64], strides = [1, 1]} : vector<64x64xf32> to vector<8x64xf32>
    %155 = vector.extract_strided_slice %153 {offsets = [0, 0], sizes = [8, 64], strides = [1, 1]} : vector<8x96xf32> to vector<8x64xf32>
    %156 = arith.addf %154, %155 : vector<8x64xf32>
    %157 = arith.negf %156 : vector<8x64xf32>
    %158 = math.exp %157 : vector<8x64xf32>
    %cst_29 = arith.constant 1.000000e+00 : f32
    %159 = vector.broadcast %cst_29 : f32 to vector<8x64xf32>
    %160 = arith.addf %159, %158 : vector<8x64xf32>
    %161 = arith.divf %159, %160 : vector<8x64xf32>
    %162 = vector.extract_strided_slice %161 {offsets = [0, 0], sizes = [8, 32], strides = [1, 1]} : vector<8x64xf32> to vector<8x32xf32>
    %163 = vector.extract_strided_slice %161 {offsets = [0, 32], sizes = [8, 32], strides = [1, 1]} : vector<8x64xf32> to vector<8x32xf32>
    %164 = vector.extract_strided_slice %10 {offsets = [48, 0], sizes = [8, 32], strides = [1, 1]} : vector<64x32xf32> to vector<8x32xf32>
    %165 = vector.extract_strided_slice %153 {offsets = [0, 64], sizes = [8, 32], strides = [1, 1]} : vector<8x96xf32> to vector<8x32xf32>
    %166 = arith.mulf %162, %165 : vector<8x32xf32>
    %167 = arith.addf %164, %166 : vector<8x32xf32>
    %168 = math.tanh %167 : vector<8x32xf32>
    %cst_30 = arith.constant 1.000000e+00 : f32
    %169 = vector.broadcast %cst_30 : f32 to vector<8x32xf32>
    %170 = arith.subf %169, %163 : vector<8x32xf32>
    %171 = arith.mulf %170, %168 : vector<8x32xf32>
    %172 = arith.mulf %163, %150 : vector<8x32xf32>
    %173 = arith.addf %171, %172 : vector<8x32xf32>
    %cst_31 = arith.constant dense<0.000000e+00> : vector<8x96xf32>
    %174 = tpu.matmul %173, %11, %cst_31 {dimension_numbers = #tpu.dot_dimension_numbers<[1], [0], [0], [1], [0, 0, 1, 1], [], []>} : vector<8x32xf32>, vector<32x96xf32>, vector<8x96xf32> -> vector<8x96xf32>
    %175 = vector.broadcast %4 : vector<1x96xf32> to vector<8x96xf32>
    %176 = arith.addf %174, %175 : vector<8x96xf32>
    %177 = vector.extract_strided_slice %9 {offsets = [56, 0], sizes = [8, 64], strides = [1, 1]} : vector<64x64xf32> to vector<8x64xf32>
    %178 = vector.extract_strided_slice %176 {offsets = [0, 0], sizes = [8, 64], strides = [1, 1]} : vector<8x96xf32> to vector<8x64xf32>
    %179 = arith.addf %177, %178 : vector<8x64xf32>
    %180 = arith.negf %179 : vector<8x64xf32>
    %181 = math.exp %180 : vector<8x64xf32>
    %cst_32 = arith.constant 1.000000e+00 : f32
    %182 = vector.broadcast %cst_32 : f32 to vector<8x64xf32>
    %183 = arith.addf %182, %181 : vector<8x64xf32>
    %184 = arith.divf %182, %183 : vector<8x64xf32>
    %185 = vector.extract_strided_slice %184 {offsets = [0, 0], sizes = [8, 32], strides = [1, 1]} : vector<8x64xf32> to vector<8x32xf32>
    %186 = vector.extract_strided_slice %184 {offsets = [0, 32], sizes = [8, 32], strides = [1, 1]} : vector<8x64xf32> to vector<8x32xf32>
    %187 = vector.extract_strided_slice %10 {offsets = [56, 0], sizes = [8, 32], strides = [1, 1]} : vector<64x32xf32> to vector<8x32xf32>
    %188 = vector.extract_strided_slice %176 {offsets = [0, 64], sizes = [8, 32], strides = [1, 1]} : vector<8x96xf32> to vector<8x32xf32>
    %189 = arith.mulf %185, %188 : vector<8x32xf32>
    %190 = arith.addf %187, %189 : vector<8x32xf32>
    %191 = math.tanh %190 : vector<8x32xf32>
    %cst_33 = arith.constant 1.000000e+00 : f32
    %192 = vector.broadcast %cst_33 : f32 to vector<8x32xf32>
    %193 = arith.subf %192, %186 : vector<8x32xf32>
    %194 = arith.mulf %193, %191 : vector<8x32xf32>
    %195 = arith.mulf %186, %173 : vector<8x32xf32>
    %196 = arith.addf %194, %195 : vector<8x32xf32>
    %197 = tpu.concatenate %35, %58, %81, %104, %127, %150, %173, %196 in 0 : vector<8x32xf32>, vector<8x32xf32>, vector<8x32xf32>, vector<8x32xf32>, vector<8x32xf32>, vector<8x32xf32>, vector<8x32xf32>, vector<8x32xf32> -> vector<64x32xf32>
    %198 = vector.shape_cast %197 : vector<64x32xf32> to vector<8x8x32xf32>
    %c0_34 = arith.constant 0 : index
    %c0_35 = arith.constant 0 : index
    %199 = vector.load %arg5[%c0_34, %c0_35] : memref<32x38xf32, #tpu.memory_space<vmem>>, vector<32x32xf32>
    %c0_36 = arith.constant 0 : index
    %c32 = arith.constant 32 : index
    %200 = vector.load %arg5[%c0_36, %c32] : memref<32x38xf32, #tpu.memory_space<vmem>>, vector<32x6xf32>
    %201 = math.tanh %200 : vector<32x6xf32>
    %cst_37 = arith.constant dense<0.000000e+00> : vector<32x6xf32>
    %202 = tpu.matmul %199, %201, %cst_37 {dimension_numbers = #tpu.dot_dimension_numbers<[1], [0], [0], [1], [0, 0, 1, 1], [], []>} : vector<32x32xf32>, vector<32x6xf32>, vector<32x6xf32> -> vector<32x6xf32>
    %203 = math.tanh %202 : vector<32x6xf32>
    %cst_38 = arith.constant dense<0.000000e+00> : vector<64x6xf32>
    %204 = tpu.matmul %197, %203, %cst_38 {dimension_numbers = #tpu.dot_dimension_numbers<[1], [0], [0], [1], [0, 0, 1, 1], [], []>} : vector<64x32xf32>, vector<32x6xf32>, vector<64x6xf32> -> vector<64x6xf32>
    %c0_39 = arith.constant 0 : index
    %c0_40 = arith.constant 0 : index
    %205 = vector.load %arg1[%c0_39, %c0_40] : memref<64x1xf32, #tpu.memory_space<vmem>>, vector<64x1xf32>
    %206 = vector.broadcast %205 : vector<64x1xf32> to vector<64x6xf32>
    %207 = arith.mulf %204, %206 : vector<64x6xf32>
    %208 = math.tanh %207 : vector<64x6xf32>
    %209 = vector.shape_cast %208 : vector<64x6xf32> to vector<8x8x6xf32>
    %210 = vector.extract_strided_slice %209 {offsets = [0, 0, 0], sizes = [8, 8, 1], strides = [1, 1, 1]} : vector<8x8x6xf32> to vector<8x8x1xf32>
    %211 = vector.broadcast %210 : vector<8x8x1xf32> to vector<8x8x32xf32>
    %212 = arith.mulf %211, %198 : vector<8x8x32xf32>
    %cst_41 = arith.constant dense<0.000000e+00> : vector<8x32xf32>
    %213 = vector.multi_reduction <add>, %212, %cst_41 [0] : vector<8x8x32xf32> to vector<8x32xf32>
    %214 = vector.extract_strided_slice %209 {offsets = [0, 0, 1], sizes = [8, 8, 1], strides = [1, 1, 1]} : vector<8x8x6xf32> to vector<8x8x1xf32>
    %215 = vector.broadcast %214 : vector<8x8x1xf32> to vector<8x8x32xf32>
    %216 = arith.mulf %215, %198 : vector<8x8x32xf32>
    %cst_42 = arith.constant dense<0.000000e+00> : vector<8x32xf32>
    %217 = vector.multi_reduction <add>, %216, %cst_42 [0] : vector<8x8x32xf32> to vector<8x32xf32>
    %218 = vector.extract_strided_slice %209 {offsets = [0, 0, 2], sizes = [8, 8, 1], strides = [1, 1, 1]} : vector<8x8x6xf32> to vector<8x8x1xf32>
    %219 = vector.broadcast %218 : vector<8x8x1xf32> to vector<8x8x32xf32>
    %220 = arith.mulf %219, %198 : vector<8x8x32xf32>
    %cst_43 = arith.constant dense<0.000000e+00> : vector<8x32xf32>
    %221 = vector.multi_reduction <add>, %220, %cst_43 [0] : vector<8x8x32xf32> to vector<8x32xf32>
    %222 = vector.extract_strided_slice %209 {offsets = [0, 0, 3], sizes = [8, 8, 1], strides = [1, 1, 1]} : vector<8x8x6xf32> to vector<8x8x1xf32>
    %223 = vector.broadcast %222 : vector<8x8x1xf32> to vector<8x8x32xf32>
    %224 = arith.mulf %223, %198 : vector<8x8x32xf32>
    %cst_44 = arith.constant dense<0.000000e+00> : vector<8x32xf32>
    %225 = vector.multi_reduction <add>, %224, %cst_44 [0] : vector<8x8x32xf32> to vector<8x32xf32>
    %226 = vector.extract_strided_slice %209 {offsets = [0, 0, 4], sizes = [8, 8, 1], strides = [1, 1, 1]} : vector<8x8x6xf32> to vector<8x8x1xf32>
    %227 = vector.broadcast %226 : vector<8x8x1xf32> to vector<8x8x32xf32>
    %228 = arith.mulf %227, %198 : vector<8x8x32xf32>
    %cst_45 = arith.constant dense<0.000000e+00> : vector<8x32xf32>
    %229 = vector.multi_reduction <add>, %228, %cst_45 [0] : vector<8x8x32xf32> to vector<8x32xf32>
    %230 = vector.extract_strided_slice %209 {offsets = [0, 0, 5], sizes = [8, 8, 1], strides = [1, 1, 1]} : vector<8x8x6xf32> to vector<8x8x1xf32>
    %231 = vector.broadcast %230 : vector<8x8x1xf32> to vector<8x8x32xf32>
    %232 = arith.mulf %231, %198 : vector<8x8x32xf32>
    %cst_46 = arith.constant dense<0.000000e+00> : vector<8x32xf32>
    %233 = vector.multi_reduction <add>, %232, %cst_46 [0] : vector<8x8x32xf32> to vector<8x32xf32>
    %234 = tpu.concatenate %213, %217, %221, %225, %229, %233 in 0 : vector<8x32xf32>, vector<8x32xf32>, vector<8x32xf32>, vector<8x32xf32>, vector<8x32xf32>, vector<8x32xf32> -> vector<48x32xf32>
    %c0_47 = arith.constant 0 : index
    %c0_48 = arith.constant 0 : index
    %235 = vector.load %arg6[%c0_47, %c0_48] : memref<33x2xf32, #tpu.memory_space<vmem>>, vector<32x2xf32>
    %c32_49 = arith.constant 32 : index
    %c0_50 = arith.constant 0 : index
    %236 = vector.load %arg6[%c32_49, %c0_50] : memref<33x2xf32, #tpu.memory_space<vmem>>, vector<1x2xf32>
    %237 = math.tanh %234 : vector<48x32xf32>
    %cst_51 = arith.constant dense<0.000000e+00> : vector<48x2xf32>
    %238 = tpu.matmul %237, %235, %cst_51 {dimension_numbers = #tpu.dot_dimension_numbers<[1], [0], [0], [1], [0, 0, 1, 1], [], []>} : vector<48x32xf32>, vector<32x2xf32>, vector<48x2xf32> -> vector<48x2xf32>
    %239 = vector.broadcast %236 : vector<1x2xf32> to vector<48x2xf32>
    %240 = arith.addf %238, %239 : vector<48x2xf32>
    %cst_52 = arith.constant dense<0xFF800000> : vector<48xf32>
    %241 = vector.multi_reduction <maximumf>, %240, %cst_52 [1] : vector<48x2xf32> to vector<48xf32>
    %242 = vector.shape_cast %241 : vector<48xf32> to vector<48x1xf32>
    %243 = vector.broadcast %242 : vector<48x1xf32> to vector<48x2xf32>
    %244 = arith.subf %240, %243 : vector<48x2xf32>
    %245 = math.exp %244 : vector<48x2xf32>
    %cst_53 = arith.constant dense<0.000000e+00> : vector<48xf32>
    %246 = vector.multi_reduction <add>, %245, %cst_53 [1] : vector<48x2xf32> to vector<48xf32>
    %247 = vector.shape_cast %246 : vector<48xf32> to vector<48x1xf32>
    %248 = math.log %247 : vector<48x1xf32>
    %249 = vector.broadcast %248 : vector<48x1xf32> to vector<48x2xf32>
    %250 = arith.subf %244, %249 : vector<48x2xf32>
    %251 = vector.shape_cast %250 : vector<48x2xf32> to vector<6x8x2xf32>
    %c0_54 = arith.constant 0 : index
    %c0_55 = arith.constant 0 : index
    %c0_56 = arith.constant 0 : index
    %252 = vector.load %arg7[%c0_54, %c0_55, %c0_56] : memref<6x8x2xf32, #tpu.memory_space<vmem>>, vector<6x8x2xf32>
    tpu.vector_store %arg7[%c0_54, %c0_55, %c0_56], %251 {strides = array<i32>} : memref<6x8x2xf32, #tpu.memory_space<vmem>>, vector<6x8x2xf32>,
    return
  }
}

</mosaic_0001>

<llo_original>
// kernel: att_model_forward.1
$region0: #{att_model_forward.1}
  #allocation0 [shape = 'u32[]', space=smem, size = 0x4, offset = 0x4, fixed_abs, tag = 'smem constant byte address 0x4 - core index']
  #allocation1 [shape = 'u32[144,128]{1,0:T(1,128)}', space=vmem, size = 0x12000, scoped, tag = 'internal scratch']
  %s0 = inlined_call_operand.vmem [shape: f32[8,8,32], index: 0, kind: input, shape index: {}]
  %s1 = inlined_call_operand.vmem [shape: f32[64,1], index: 1, kind: input, shape index: {}]
  %s2 = inlined_call_operand.vmem [shape: f32[32,96], index: 2, kind: input, shape index: {}]
  %s3 = inlined_call_operand.vmem [shape: f32[32,96], index: 3, kind: input, shape index: {}]
  %s4 = inlined_call_operand.vmem [shape: f32[2,96], index: 4, kind: input, shape index: {}]
  %s5 = inlined_call_operand.vmem [shape: f32[32,38], index: 5, kind: input, shape index: {}]
  %s6 = inlined_call_operand.vmem [shape: f32[33,2], index: 6, kind: input, shape index: {}]
  %s7 = inlined_call_operand.vmem [shape: f32[6,8,2], index: 7, kind: output, shape index: {}]
  %s8 = sld [smem:[#allocation0]]
  $region38: #{att_model_forward.1} parent=0
    _
  %s10 = ssub.s32 1, %s8
  %s11 = scalar_select 0, %s10, %s8
  // Predicated region
  $region2: #{att_model_forward.1} parent=0 // pred_check
    _
  $region3: #{att_model_forward.1} parent=0 // pred_check_branch
    %13 = sbr.rel (0) target = $region5
  $region4: #{att_model_forward.1} parent=0 // pred_region
    _
  $region5: #{att_model_forward.1} parent=0 // pred_fallthru
    _
  // Predicated region
  $region6: #{att_model_forward.1} parent=0 // pred_check
    _
  $region7: #{att_model_forward.1} parent=0 // pred_check_branch
    %15 = sbr.rel (0) target = $region9
  $region8: #{att_model_forward.1} parent=0 // pred_region
    _
  $region9: #{att_model_forward.1} parent=0 // pred_fallthru
    _
  // Predicated region
  $region10: #{att_model_forward.1} parent=0 // pred_check
    _
  $region11: #{att_model_forward.1} parent=0 // pred_check_branch
    %17 = sbr.rel (0) target = $region13
  $region12: #{att_model_forward.1} parent=0 // pred_region
    _
  $region13: #{att_model_forward.1} parent=0 // pred_fallthru
    _
  // Predicated region
  $region14: #{att_model_forward.1} parent=0 // pred_check
    _
  $region15: #{att_model_forward.1} parent=0 // pred_check_branch
    %19 = sbr.rel (0) target = $region17
  $region16: #{att_model_forward.1} parent=0 // pred_region
    _
  $region17: #{att_model_forward.1} parent=0 // pred_fallthru
    _
  // Predicated region
  $region18: #{att_model_forward.1} parent=0 // pred_check
    _
  $region19: #{att_model_forward.1} parent=0 // pred_check_branch
    %21 = sbr.rel (0) target = $region21
  $region20: #{att_model_forward.1} parent=0 // pred_region
    _
  $region21: #{att_model_forward.1} parent=0 // pred_fallthru
    _
  // Predicated region
  $region22: #{att_model_forward.1} parent=0 // pred_check
    _
  $region23: #{att_model_forward.1} parent=0 // pred_check_branch
    %23 = sbr.rel (0) target = $region25
  $region24: #{att_model_forward.1} parent=0 // pred_region
    _
  $region25: #{att_model_forward.1} parent=0 // pred_fallthru
    _
  // Predicated region
  $region26: #{att_model_forward.1} parent=0 // pred_check
    _
  $region27: #{att_model_forward.1} parent=0 // pred_check_branch
    %25 = sbr.rel (0) target = $region29
  $region28: #{att_model_forward.1} parent=0 // pred_region
    _
  $region29: #{att_model_forward.1} parent=0 // pred_fallthru
    _
  %v26 = vld [vmem:[%s0] sm:$0xff]
  %v27 = vld [vmem:[%s0 + $0x8] sm:$0xff]
  %v28 = vld [vmem:[%s0 + $0x10] sm:$0xff]
  %v29 = vld [vmem:[%s0 + $0x18] sm:$0xff]
  %v30 = vld [vmem:[%s0 + $0x20] sm:$0xff]
  %v31 = vld [vmem:[%s0 + $0x28] sm:$0xff]
  %v32 = vld [vmem:[%s0 + $0x30] sm:$0xff]
  %v33 = vld [vmem:[%s0 + $0x38] sm:$0xff]
  %v34 = vtanh.pop %v26
  %v35 = vtanh.pop %v27
  %v36 = vtanh.pop %v28
  %v37 = vtanh.pop %v29
  %v38 = vtanh.pop %v30
  %v39 = vtanh.pop %v31
  %v40 = vtanh.pop %v32
  %v41 = vtanh.pop %v33
  %v42 = vld [vmem:[%s4] sm:$0x1]
  %v43 = vld [vmem:[%s4 + $0x1] sm:$0x1]
  %v44 = vld [vmem:[%s2] sm:$0xff]
  %v45 = vld [vmem:[%s2 + $0x8] sm:$0xff]
  %v46 = vld [vmem:[%s2 + $0x10] sm:$0xff]
  %v47 = vld [vmem:[%s2 + $0x18] sm:$0xff]
  %v48 = vlaneseq
  %v49 = vshrl.u32 %v48, 7
  %v50 = vsub.s32 0, %v49
  %v51 = vrot.slane %v42, %v50
  %vm52 = vcmask 261120
  %v54 = vsel %vm52, %v34, 0
  %v57 = vsel %vm52, %v35, 0
  %v60 = vsel %vm52, %v36, 0
  %v63 = vsel %vm52, %v37, 0
  %v66 = vsel %vm52, %v38, 0
  %v69 = vsel %vm52, %v39, 0
  %v72 = vsel %vm52, %v40, 0
  %v75 = vsel %vm52, %v41, 0
  %77 = vmatprep.subr.mxu0 0.0
  %78 = vmatpush1.msra.mxu0 0.0
  %79 = vmatprep.subr.mxu0 0.0
  %80 = vmatpush1.msra.mxu0 0.0
  %81 = vmatprep.subr.mxu0 0.0
  %82 = vmatpush1.msra.mxu0 0.0
  %83 = vmatprep.subr.mxu0 0.0
  %84 = vmatpush1.msra.mxu0 0.0
  %85 = vmatprep.subr.mxu0 0.0
  %86 = vmatpush1.msra.mxu0 0.0
  %87 = vmatprep.subr.mxu0 0.0
  %88 = vmatpush1.msra.mxu0 0.0
  %89 = vmatprep.subr.mxu0 0.0
  %90 = vmatpush1.msra.mxu0 0.0
  %91 = vmatprep.subr.mxu0 0.0
  %92 = vmatpush1.msra.mxu0 0.0
  %93 = vmatprep.subr.mxu0 0.0
  %94 = vmatpush1.msra.mxu0 0.0
  %95 = vmatprep.subr.mxu0 0.0
  %96 = vmatpush1.msra.mxu0 0.0
  %97 = vmatprep.subr.mxu0 0.0
  %98 = vmatpush1.msra.mxu0 0.0
  %99 = vmatprep.subr.mxu0 0.0
  %100 = vmatpush1.msra.mxu0 0.0
  %101 = vmatprep.subr.mxu0 0.0
  %102 = vmatpush1.msra.mxu0 %v47
  %103 = vmatprep.subr.mxu0 0.0
  %104 = vmatpush1.msra.mxu0 %v46
  %105 = vmatprep.subr.mxu0 0.0
  %106 = vmatpush1.msra.mxu0 %v45
  %107 = vmatprep.subr.mxu0 0.0
  %108 = vmatpush1.msra.mxu0 %v44
  %109 = vmatprep.subr.mxu0 0.0
  %110 = vmatpush2.msra.mxu0 0.0
  %111 = vmatprep.subr.mxu0 0.0
  %112 = vmatpush2.msra.mxu0 0.0
  %113 = vmatprep.subr.mxu0 0.0
  %114 = vmatpush2.msra.mxu0 0.0
  %115 = vmatprep.subr.mxu0 0.0
  %116 = vmatpush2.msra.mxu0 0.0
  %117 = vmatprep.subr.mxu0 0.0
  %118 = vmatpush2.msra.mxu0 0.0
  %119 = vmatprep.subr.mxu0 0.0
  %120 = vmatpush2.msra.mxu0 0.0
  %121 = vmatprep.subr.mxu0 0.0
  %122 = vmatpush2.msra.mxu0 0.0
  %123 = vmatprep.subr.mxu0 0.0
  %124 = vmatpush2.msra.mxu0 0.0
  %125 = vmatprep.subr.mxu0 0.0
  %126 = vmatpush2.msra.mxu0 0.0
  %127 = vmatprep.subr.mxu0 0.0
  %128 = vmatpush2.msra.mxu0 0.0
  %129 = vmatprep.subr.mxu0 0.0
  %130 = vmatpush2.msra.mxu0 0.0
  %131 = vmatprep.subr.mxu0 0.0
  %132 = vmatpush2.msra.mxu0 0.0
  %133 = vmatprep.subr.mxu0 0.0
  %134 = vmatpush2.msra.mxu0 0.0
  %135 = vmatprep.subr.mxu0 0.0
  %136 = vmatpush2.msra.mxu0 0.0
  %137 = vmatprep.subr.mxu0 0.0
  %138 = vmatpush2.msra.mxu0 0.0
  %139 = vmatprep.subr.mxu0 0.0
  %140 = vmatpush2.msra.mxu0 0.0
  %141 = vmatprep.mubr.f32.mxu0 0.0
  %142 = vmatmul.mubr.f32.gmra.mxu0 %v54
  %v143 = vpop.f32.mrf.mxu0
  %v144 = vadd.f32 %v51, %v143
  %v145 = vpop.f32.mrf.mxu0
  %146 = vmatprep.mubr.f32.mxu0 0.0
  %147 = vmatmul.mubr.f32.gmra.mxu0 %v57
  %v148 = vpop.f32.mrf.mxu0
  %v149 = vadd.f32 %v51, %v148
  %v150 = vpop.f32.mrf.mxu0
  %151 = vmatprep.mubr.f32.mxu0 0.0
  %152 = vmatmul.mubr.f32.gmra.mxu0 %v60
  %v153 = vpop.f32.mrf.mxu0
  %v154 = vadd.f32 %v51, %v153
  %v155 = vpop.f32.mrf.mxu0
  %156 = vmatprep.mubr.f32.mxu0 0.0
  %157 = vmatmul.mubr.f32.gmra.mxu0 %v63
  %v158 = vpop.f32.mrf.mxu0
  %v159 = vadd.f32 %v51, %v158
  %v160 = vpop.f32.mrf.mxu0
  %161 = vmatprep.mubr.f32.mxu0 0.0
  %162 = vmatmul.mubr.f32.gmra.mxu0 %v66
  %v163 = vpop.f32.mrf.mxu0
  %v164 = vadd.f32 %v51, %v163
  %v165 = vpop.f32.mrf.mxu0
  %166 = vmatprep.mubr.f32.mxu0 0.0
  %167 = vmatmul.mubr.f32.gmra.mxu0 %v69
  %v168 = vpop.f32.mrf.mxu0
  %v169 = vadd.f32 %v51, %v168
  %v170 = vpop.f32.mrf.mxu0
  %171 = vmatprep.mubr.f32.mxu0 0.0
  %172 = vmatmul.mubr.f32.gmra.mxu0 %v72
  %v173 = vpop.f32.mrf.mxu0
  %v174 = vadd.f32 %v51, %v173
  %v175 = vpop.f32.mrf.mxu0
  %176 = vmatprep.mubr.f32.mxu0 0.0
  %177 = vmatmul.mubr.f32.gmra.mxu0 %v75
  %v178 = vpop.f32.mrf.mxu0
  %v179 = vadd.f32 %v51, %v178
  %v180 = vpop.f32.mrf.mxu0
  %181 = vdwg.mxu0
  %v182 = vld [vmem:[%s3] sm:$0xff]
  %v183 = vld [vmem:[%s3 + $0x8] sm:$0xff]
  %v184 = vld [vmem:[%s3 + $0x10] sm:$0xff]
  %v185 = vld [vmem:[%s3 + $0x18] sm:$0xff]
  %v186 = vlaneseq
  %v187 = vshrl.u32 %v186, 7
  %v188 = vsub.s32 0, %v187
  %v189 = vrot.slane %v43, %v188
  %v191 = vsel %vm52, 0.0, 0
  %193 = vmatprep.subr.mxu0 0.0
  %194 = vmatpush1.msra.mxu0 0.0
  %195 = vmatprep.subr.mxu0 0.0
  %196 = vmatpush1.msra.mxu0 0.0
  %197 = vmatprep.subr.mxu0 0.0
  %198 = vmatpush1.msra.mxu0 0.0
  %199 = vmatprep.subr.mxu0 0.0
  %200 = vmatpush1.msra.mxu0 0.0
  %201 = vmatprep.subr.mxu0 0.0
  %202 = vmatpush1.msra.mxu0 0.0
  %203 = vmatprep.subr.mxu0 0.0
  %204 = vmatpush1.msra.mxu0 0.0
  %205 = vmatprep.subr.mxu0 0.0
  %206 = vmatpush1.msra.mxu0 0.0
  %207 = vmatprep.subr.mxu0 0.0
  %208 = vmatpush1.msra.mxu0 0.0
  %209 = vmatprep.subr.mxu0 0.0
  %210 = vmatpush1.msra.mxu0 0.0
  %211 = vmatprep.subr.mxu0 0.0
  %212 = vmatpush1.msra.mxu0 0.0
  %213 = vmatprep.subr.mxu0 0.0
  %214 = vmatpush1.msra.mxu0 0.0
  %215 = vmatprep.subr.mxu0 0.0
  %216 = vmatpush1.msra.mxu0 0.0
  %217 = vmatprep.subr.mxu0 0.0
  %218 = vmatpush1.msra.mxu0 %v185
  %219 = vmatprep.subr.mxu0 0.0
  %220 = vmatpush1.msra.mxu0 %v184
  %221 = vmatprep.subr.mxu0 0.0
  %222 = vmatpush1.msra.mxu0 %v183
  %223 = vmatprep.subr.mxu0 0.0
  %224 = vmatpush1.msra.mxu0 %v182
  %225 = vmatprep.subr.mxu0 0.0
  %226 = vmatpush2.msra.mxu0 0.0
  %227 = vmatprep.subr.mxu0 0.0
  %228 = vmatpush2.msra.mxu0 0.0
  %229 = vmatprep.subr.mxu0 0.0
  %230 = vmatpush2.msra.mxu0 0.0
  %231 = vmatprep.subr.mxu0 0.0
  %232 = vmatpush2.msra.mxu0 0.0
  %233 = vmatprep.subr.mxu0 0.0
  %234 = vmatpush2.msra.mxu0 0.0
  %235 = vmatprep.subr.mxu0 0.0
  %236 = vmatpush2.msra.mxu0 0.0
  %237 = vmatprep.subr.mxu0 0.0
  %238 = vmatpush2.msra.mxu0 0.0
  %239 = vmatprep.subr.mxu0 0.0
  %240 = vmatpush2.msra.mxu0 0.0
  %241 = vmatprep.subr.mxu0 0.0
  %242 = vmatpush2.msra.mxu0 0.0
  %243 = vmatprep.subr.mxu0 0.0
  %244 = vmatpush2.msra.mxu0 0.0
  %245 = vmatprep.subr.mxu0 0.0
  %246 = vmatpush2.msra.mxu0 0.0
  %247 = vmatprep.subr.mxu0 0.0
  %248 = vmatpush2.msra.mxu0 0.0
  %249 = vmatprep.subr.mxu0 0.0
  %250 = vmatpush2.msra.mxu0 0.0
  %251 = vmatprep.subr.mxu0 0.0
  %252 = vmatpush2.msra.mxu0 0.0
  %253 = vmatprep.subr.mxu0 0.0
  %254 = vmatpush2.msra.mxu0 0.0
  %255 = vmatprep.subr.mxu0 0.0
  %256 = vmatpush2.msra.mxu0 0.0
  %257 = vmatprep.mubr.f32.mxu0 0.0
  %258 = vmatmul.mubr.f32.gmra.mxu0 %v191
  %v259 = vpop.f32.mrf.mxu0
  %v260 = vadd.f32 %v189, %v259
  %v261 = vpop.f32.mrf.mxu0
  %262 = vdwg.mxu0
  %v263 = vadd.f32 %v144, %v260
  %v264 = vxor.u32 %v263, 2147483648
  %v265 = vmul.f32 %v264, 1.442695
  %v266 = vpow.pop %v265
  %v267 = vadd.f32 %v266, 1.0
  %v268 = vrcp.pop %v267
  %v269 = vmul.f32 1.0, %v268
  %271 = vrot.lane.b32.xlu0 %v260, 64
  %v272 = vpop.permute.xlu0 %271
  %v274 = vmul.f32 %v269, %v272
  %276 = vrot.lane.b32.xlu0 %v274, 64
  %v277 = vpop.permute.xlu0 %276
  %v279 = vadd.f32 %v144, %v277
  %v280 = vtanh.pop %v279
  %v281 = vsub.f32 1.0, %v269
  %283 = vrot.lane.b32.xlu0 %v280, 96
  %v284 = vpop.permute.xlu0 %283
  %v286 = vmul.f32 %v281, %v284
  %v287 = vmul.f32 %v269, 0.0
  %v288 = vadd.f32 %v286, %v287
  %290 = vrot.lane.b32.xlu0 %v288, 96
  %v291 = vpop.permute.xlu0 %290
  %v292 = vsel %vm52, %v291, 0
  %294 = vmatprep.subr.mxu0 0.0
  %295 = vmatpush1.msra.mxu0 0.0
  %296 = vmatprep.subr.mxu0 0.0
  %297 = vmatpush1.msra.mxu0 0.0
  %298 = vmatprep.subr.mxu0 0.0
  %299 = vmatpush1.msra.mxu0 0.0
  %300 = vmatprep.subr.mxu0 0.0
  %301 = vmatpush1.msra.mxu0 0.0
  %302 = vmatprep.subr.mxu0 0.0
  %303 = vmatpush1.msra.mxu0 0.0
  %304 = vmatprep.subr.mxu0 0.0
  %305 = vmatpush1.msra.mxu0 0.0
  %306 = vmatprep.subr.mxu0 0.0
  %307 = vmatpush1.msra.mxu0 0.0
  %308 = vmatprep.subr.mxu0 0.0
  %309 = vmatpush1.msra.mxu0 0.0
  %310 = vmatprep.subr.mxu0 0.0
  %311 = vmatpush1.msra.mxu0 0.0
  %312 = vmatprep.subr.mxu0 0.0
  %313 = vmatpush1.msra.mxu0 0.0
  %314 = vmatprep.subr.mxu0 0.0
  %315 = vmatpush1.msra.mxu0 0.0
  %316 = vmatprep.subr.mxu0 0.0
  %317 = vmatpush1.msra.mxu0 0.0
  %318 = vmatprep.subr.mxu0 0.0
  %319 = vmatpush1.msra.mxu0 %v185
  %320 = vmatprep.subr.mxu0 0.0
  %321 = vmatpush1.msra.mxu0 %v184
  %322 = vmatprep.subr.mxu0 0.0
  %323 = vmatpush1.msra.mxu0 %v183
  %324 = vmatprep.subr.mxu0 0.0
  %325 = vmatpush1.msra.mxu0 %v182
  %326 = vmatprep.subr.mxu0 0.0
  %327 = vmatpush2.msra.mxu0 0.0
  %328 = vmatprep.subr.mxu0 0.0
  %329 = vmatpush2.msra.mxu0 0.0
  %330 = vmatprep.subr.mxu0 0.0
  %331 = vmatpush2.msra.mxu0 0.0
  %332 = vmatprep.subr.mxu0 0.0
  %333 = vmatpush2.msra.mxu0 0.0
  %334 = vmatprep.subr.mxu0 0.0
  %335 = vmatpush2.msra.mxu0 0.0
  %336 = vmatprep.subr.mxu0 0.0
  %337 = vmatpush2.msra.mxu0 0.0
  %338 = vmatprep.subr.mxu0 0.0
  %339 = vmatpush2.msra.mxu0 0.0
  %340 = vmatprep.subr.mxu0 0.0
  %341 = vmatpush2.msra.mxu0 0.0
  %342 = vmatprep.subr.mxu0 0.0
  %343 = vmatpush2.msra.mxu0 0.0
  %344 = vmatprep.subr.mxu0 0.0
  %345 = vmatpush2.msra.mxu0 0.0
  %346 = vmatprep.subr.mxu0 0.0
  %347 = vmatpush2.msra.mxu0 0.0
  %348 = vmatprep.subr.mxu0 0.0
  %349 = vmatpush2.msra.mxu0 0.0
  %350 = vmatprep.subr.mxu0 0.0
  %351 = vmatpush2.msra.mxu0 0.0
  %352 = vmatprep.subr.mxu0 0.0
  %353 = vmatpush2.msra.mxu0 0.0
  %354 = vmatprep.subr.mxu0 0.0
  %355 = vmatpush2.msra.mxu0 0.0
  %356 = vmatprep.subr.mxu0 0.0
  %357 = vmatpush2.msra.mxu0 0.0
  %358 = vmatprep.mubr.f32.mxu0 0.0
  %359 = vmatmul.mubr.f32.gmra.mxu0 %v292
  %v360 = vpop.f32.mrf.mxu0
  %v361 = vadd.f32 %v189, %v360
  %v362 = vpop.f32.mrf.mxu0
  %363 = vdwg.mxu0
  %v364 = vadd.f32 %v149, %v361
  %v365 = vxor.u32 %v364, 2147483648
  %v366 = vmul.f32 %v365, 1.442695
  %v367 = vpow.pop %v366
  %v368 = vadd.f32 %v367, 1.0
  %v369 = vrcp.pop %v368
  %v370 = vmul.f32 1.0, %v369
  %372 = vrot.lane.b32.xlu0 %v361, 64
  %v373 = vpop.permute.xlu0 %372
  %v375 = vmul.f32 %v370, %v373
  %377 = vrot.lane.b32.xlu0 %v375, 64
  %v378 = vpop.permute.xlu0 %377
  %v380 = vadd.f32 %v149, %v378
  %v381 = vtanh.pop %v380
  %v382 = vsub.f32 1.0, %v370
  %384 = vrot.lane.b32.xlu0 %v381, 96
  %v385 = vpop.permute.xlu0 %384
  %v387 = vmul.f32 %v382, %v385
  %v388 = vmul.f32 %v370, %v288
  %v389 = vadd.f32 %v387, %v388
  %391 = vrot.lane.b32.xlu0 %v389, 96
  %v392 = vpop.permute.xlu0 %391
  %v393 = vsel %vm52, %v392, 0
  %395 = vmatprep.subr.mxu0 0.0
  %396 = vmatpush1.msra.mxu0 0.0
  %397 = vmatprep.subr.mxu0 0.0
  %398 = vmatpush1.msra.mxu0 0.0
  %399 = vmatprep.subr.mxu0 0.0
  %400 = vmatpush1.msra.mxu0 0.0
  %401 = vmatprep.subr.mxu0 0.0
  %402 = vmatpush1.msra.mxu0 0.0
  %403 = vmatprep.subr.mxu0 0.0
  %404 = vmatpush1.msra.mxu0 0.0
  %405 = vmatprep.subr.mxu0 0.0
  %406 = vmatpush1.msra.mxu0 0.0
  %407 = vmatprep.subr.mxu0 0.0
  %408 = vmatpush1.msra.mxu0 0.0
  %409 = vmatprep.subr.mxu0 0.0
  %410 = vmatpush1.msra.mxu0 0.0
  %411 = vmatprep.subr.mxu0 0.0
  %412 = vmatpush1.msra.mxu0 0.0
  %413 = vmatprep.subr.mxu0 0.0
  %414 = vmatpush1.msra.mxu0 0.0
  %415 = vmatprep.subr.mxu0 0.0
  %416 = vmatpush1.msra.mxu0 0.0
  %417 = vmatprep.subr.mxu0 0.0
  %418 = vmatpush1.msra.mxu0 0.0
  %419 = vmatprep.subr.mxu0 0.0
  %420 = vmatpush1.msra.mxu0 %v185
  %421 = vmatprep.subr.mxu0 0.0
  %422 = vmatpush1.msra.mxu0 %v184
  %423 = vmatprep.subr.mxu0 0.0
  %424 = vmatpush1.msra.mxu0 %v183
  %425 = vmatprep.subr.mxu0 0.0
  %426 = vmatpush1.msra.mxu0 %v182
  %427 = vmatprep.subr.mxu0 0.0
  %428 = vmatpush2.msra.mxu0 0.0
  %429 = vmatprep.subr.mxu0 0.0
  %430 = vmatpush2.msra.mxu0 0.0
  %431 = vmatprep.subr.mxu0 0.0
  %432 = vmatpush2.msra.mxu0 0.0
  %433 = vmatprep.subr.mxu0 0.0
  %434 = vmatpush2.msra.mxu0 0.0
  %435 = vmatprep.subr.mxu0 0.0
  %436 = vmatpush2.msra.mxu0 0.0
  %437 = vmatprep.subr.mxu0 0.0
  %438 = vmatpush2.msra.mxu0 0.0
  %439 = vmatprep.subr.mxu0 0.0
  %440 = vmatpush2.msra.mxu0 0.0
  %441 = vmatprep.subr.mxu0 0.0
  %442 = vmatpush2.msra.mxu0 0.0
  %443 = vmatprep.subr.mxu0 0.0
  %444 = vmatpush2.msra.mxu0 0.0
  %445 = vmatprep.subr.mxu0 0.0
  %446 = vmatpush2.msra.mxu0 0.0
  %447 = vmatprep.subr.mxu0 0.0
  %448 = vmatpush2.msra.mxu0 0.0
  %449 = vmatprep.subr.mxu0 0.0
  %450 = vmatpush2.msra.mxu0 0.0
  %451 = vmatprep.subr.mxu0 0.0
  %452 = vmatpush2.msra.mxu0 0.0
  %453 = vmatprep.subr.mxu0 0.0
  %454 = vmatpush2.msra.mxu0 0.0
  %455 = vmatprep.subr.mxu0 0.0
  %456 = vmatpush2.msra.mxu0 0.0
  %457 = vmatprep.subr.mxu0 0.0
  %458 = vmatpush2.msra.mxu0 0.0
  %459 = vmatprep.mubr.f32.mxu0 0.0
  %460 = vmatmul.mubr.f32.gmra.mxu0 %v393
  %v461 = vpop.f32.mrf.mxu0
  %v462 = vadd.f32 %v189, %v461
  %v463 = vpop.f32.mrf.mxu0
  %464 = vdwg.mxu0
  %v465 = vadd.f32 %v154, %v462
  %v466 = vxor.u32 %v465, 2147483648
  %v467 = vmul.f32 %v466, 1.442695
  %v468 = vpow.pop %v467
  %v469 = vadd.f32 %v468, 1.0
  %v470 = vrcp.pop %v469
  %v471 = vmul.f32 1.0, %v470
  %473 = vrot.lane.b32.xlu0 %v462, 64
  %v474 = vpop.permute.xlu0 %473
  %v476 = vmul.f32 %v471, %v474
  %478 = vrot.lane.b32.xlu0 %v476, 64
  %v479 = vpop.permute.xlu0 %478
  %v481 = vadd.f32 %v154, %v479
  %v482 = vtanh.pop %v481
  %v483 = vsub.f32 1.0, %v471
  %485 = vrot.lane.b32.xlu0 %v482, 96
  %v486 = vpop.permute.xlu0 %485
  %v488 = vmul.f32 %v483, %v486
  %v489 = vmul.f32 %v471, %v389
  %v490 = vadd.f32 %v488, %v489
  %492 = vrot.lane.b32.xlu0 %v490, 96
  %v493 = vpop.permute.xlu0 %492
  %v494 = vsel %vm52, %v493, 0
  %496 = vmatprep.subr.mxu0 0.0
  %497 = vmatpush1.msra.mxu0 0.0
  %498 = vmatprep.subr.mxu0 0.0
  %499 = vmatpush1.msra.mxu0 0.0
  %500 = vmatprep.subr.mxu0 0.0
  %501 = vmatpush1.msra.mxu0 0.0
  %502 = vmatprep.subr.mxu0 0.0
  %503 = vmatpush1.msra.mxu0 0.0
  %504 = vmatprep.subr.mxu0 0.0
  %505 = vmatpush1.msra.mxu0 0.0
  %506 = vmatprep.subr.mxu0 0.0
  %507 = vmatpush1.msra.mxu0 0.0
  %508 = vmatprep.subr.mxu0 0.0
  %509 = vmatpush1.msra.mxu0 0.0
  %510 = vmatprep.subr.mxu0 0.0
  %511 = vmatpush1.msra.mxu0 0.0
  %512 = vmatprep.subr.mxu0 0.0
  %513 = vmatpush1.msra.mxu0 0.0
  %514 = vmatprep.subr.mxu0 0.0
  %515 = vmatpush1.msra.mxu0 0.0
  %516 = vmatprep.subr.mxu0 0.0
  %517 = vmatpush1.msra.mxu0 0.0
  %518 = vmatprep.subr.mxu0 0.0
  %519 = vmatpush1.msra.mxu0 0.0
  %520 = vmatprep.subr.mxu0 0.0
  %521 = vmatpush1.msra.mxu0 %v185
  %522 = vmatprep.subr.mxu0 0.0
  %523 = vmatpush1.msra.mxu0 %v184
  %524 = vmatprep.subr.mxu0 0.0
  %525 = vmatpush1.msra.mxu0 %v183
  %526 = vmatprep.subr.mxu0 0.0
  %527 = vmatpush1.msra.mxu0 %v182
  %528 = vmatprep.subr.mxu0 0.0
  %529 = vmatpush2.msra.mxu0 0.0
  %530 = vmatprep.subr.mxu0 0.0
  %531 = vmatpush2.msra.mxu0 0.0
  %532 = vmatprep.subr.mxu0 0.0
  %533 = vmatpush2.msra.mxu0 0.0
  %534 = vmatprep.subr.mxu0 0.0
  %535 = vmatpush2.msra.mxu0 0.0
  %536 = vmatprep.subr.mxu0 0.0
  %537 = vmatpush2.msra.mxu0 0.0
  %538 = vmatprep.subr.mxu0 0.0
  %539 = vmatpush2.msra.mxu0 0.0
  %540 = vmatprep.subr.mxu0 0.0
  %541 = vmatpush2.msra.mxu0 0.0
  %542 = vmatprep.subr.mxu0 0.0
  %543 = vmatpush2.msra.mxu0 0.0
  %544 = vmatprep.subr.mxu0 0.0
  %545 = vmatpush2.msra.mxu0 0.0
  %546 = vmatprep.subr.mxu0 0.0
  %547 = vmatpush2.msra.mxu0 0.0
  %548 = vmatprep.subr.mxu0 0.0
  %549 = vmatpush2.msra.mxu0 0.0
  %550 = vmatprep.subr.mxu0 0.0
  %551 = vmatpush2.msra.mxu0 0.0
  %552 = vmatprep.subr.mxu0 0.0
  %553 = vmatpush2.msra.mxu0 0.0
  %554 = vmatprep.subr.mxu0 0.0
  %555 = vmatpush2.msra.mxu0 0.0
  %556 = vmatprep.subr.mxu0 0.0
  %557 = vmatpush2.msra.mxu0 0.0
  %558 = vmatprep.subr.mxu0 0.0
  %559 = vmatpush2.msra.mxu0 0.0
  %560 = vmatprep.mubr.f32.mxu0 0.0
  %561 = vmatmul.mubr.f32.gmra.mxu0 %v494
  %v562 = vpop.f32.mrf.mxu0
  %v563 = vadd.f32 %v189, %v562
  %v564 = vpop.f32.mrf.mxu0
  %565 = vdwg.mxu0
  %v566 = vadd.f32 %v159, %v563
  %v567 = vxor.u32 %v566, 2147483648
  %v568 = vmul.f32 %v567, 1.442695
  %v569 = vpow.pop %v568
  %v570 = vadd.f32 %v569, 1.0
  %v571 = vrcp.pop %v570
  %v572 = vmul.f32 1.0, %v571
  %574 = vrot.lane.b32.xlu0 %v563, 64
  %v575 = vpop.permute.xlu0 %574
  %v577 = vmul.f32 %v572, %v575
  %579 = vrot.lane.b32.xlu0 %v577, 64
  %v580 = vpop.permute.xlu0 %579
  %v582 = vadd.f32 %v159, %v580
  %v583 = vtanh.pop %v582
  %v584 = vsub.f32 1.0, %v572
  %586 = vrot.lane.b32.xlu0 %v583, 96
  %v587 = vpop.permute.xlu0 %586
  %v589 = vmul.f32 %v584, %v587
  %v590 = vmul.f32 %v572, %v490
  %v591 = vadd.f32 %v589, %v590
  %593 = vrot.lane.b32.xlu0 %v591, 96
  %v594 = vpop.permute.xlu0 %593
  %v595 = vsel %vm52, %v594, 0
  %597 = vmatprep.subr.mxu0 0.0
  %598 = vmatpush1.msra.mxu0 0.0
  %599 = vmatprep.subr.mxu0 0.0
  %600 = vmatpush1.msra.mxu0 0.0
  %601 = vmatprep.subr.mxu0 0.0
  %602 = vmatpush1.msra.mxu0 0.0
  %603 = vmatprep.subr.mxu0 0.0
  %604 = vmatpush1.msra.mxu0 0.0
  %605 = vmatprep.subr.mxu0 0.0
  %606 = vmatpush1.msra.mxu0 0.0
  %607 = vmatprep.subr.mxu0 0.0
  %608 = vmatpush1.msra.mxu0 0.0
  %609 = vmatprep.subr.mxu0 0.0
  %610 = vmatpush1.msra.mxu0 0.0
  %611 = vmatprep.subr.mxu0 0.0
  %612 = vmatpush1.msra.mxu0 0.0
  %613 = vmatprep.subr.mxu0 0.0
  %614 = vmatpush1.msra.mxu0 0.0
  %615 = vmatprep.subr.mxu0 0.0
  %616 = vmatpush1.msra.mxu0 0.0
  %617 = vmatprep.subr.mxu0 0.0
  %618 = vmatpush1.msra.mxu0 0.0
  %619 = vmatprep.subr.mxu0 0.0
  %620 = vmatpush1.msra.mxu0 0.0
  %621 = vmatprep.subr.mxu0 0.0
  %622 = vmatpush1.msra.mxu0 %v185
  %623 = vmatprep.subr.mxu0 0.0
  %624 = vmatpush1.msra.mxu0 %v184
  %625 = vmatprep.subr.mxu0 0.0
  %626 = vmatpush1.msra.mxu0 %v183
  %627 = vmatprep.subr.mxu0 0.0
  %628 = vmatpush1.msra.mxu0 %v182
  %629 = vmatprep.subr.mxu0 0.0
  %630 = vmatpush2.msra.mxu0 0.0
  %631 = vmatprep.subr.mxu0 0.0
  %632 = vmatpush2.msra.mxu0 0.0
  %633 = vmatprep.subr.mxu0 0.0
  %634 = vmatpush2.msra.mxu0 0.0
  %635 = vmatprep.subr.mxu0 0.0
  %636 = vmatpush2.msra.mxu0 0.0
  %637 = vmatprep.subr.mxu0 0.0
  %638 = vmatpush2.msra.mxu0 0.0
  %639 = vmatprep.subr.mxu0 0.0
  %640 = vmatpush2.msra.mxu0 0.0
  %641 = vmatprep.subr.mxu0 0.0
  %642 = vmatpush2.msra.mxu0 0.0
  %643 = vmatprep.subr.mxu0 0.0
  %644 = vmatpush2.msra.mxu0 0.0
  %645 = vmatprep.subr.mxu0 0.0
  %646 = vmatpush2.msra.mxu0 0.0
  %647 = vmatprep.subr.mxu0 0.0
  %648 = vmatpush2.msra.mxu0 0.0
  %649 = vmatprep.subr.mxu0 0.0
  %650 = vmatpush2.msra.mxu0 0.0
  %651 = vmatprep.subr.mxu0 0.0
  %652 = vmatpush2.msra.mxu0 0.0
  %653 = vmatprep.subr.mxu0 0.0
  %654 = vmatpush2.msra.mxu0 0.0
  %655 = vmatprep.subr.mxu0 0.0
  %656 = vmatpush2.msra.mxu0 0.0
  %657 = vmatprep.subr.mxu0 0.0
  %658 = vmatpush2.msra.mxu0 0.0
  %659 = vmatprep.subr.mxu0 0.0
  %660 = vmatpush2.msra.mxu0 0.0
  %661 = vmatprep.mubr.f32.mxu0 0.0
  %662 = vmatmul.mubr.f32.gmra.mxu0 %v595
  %v663 = vpop.f32.mrf.mxu0
  %v664 = vadd.f32 %v189, %v663
  %v665 = vpop.f32.mrf.mxu0
  %666 = vdwg.mxu0
  %v667 = vadd.f32 %v164, %v664
  %v668 = vxor.u32 %v667, 2147483648
  %v669 = vmul.f32 %v668, 1.442695
  %v670 = vpow.pop %v669
  %v671 = vadd.f32 %v670, 1.0
  %v672 = vrcp.pop %v671
  %v673 = vmul.f32 1.0, %v672
  %675 = vrot.lane.b32.xlu0 %v664, 64
  %v676 = vpop.permute.xlu0 %675
  %v678 = vmul.f32 %v673, %v676
  %680 = vrot.lane.b32.xlu0 %v678, 64
  %v681 = vpop.permute.xlu0 %680
  %v683 = vadd.f32 %v164, %v681
  %v684 = vtanh.pop %v683
  %v685 = vsub.f32 1.0, %v673
  %687 = vrot.lane.b32.xlu0 %v684, 96
  %v688 = vpop.permute.xlu0 %687
  %v690 = vmul.f32 %v685, %v688
  %v691 = vmul.f32 %v673, %v591
  %v692 = vadd.f32 %v690, %v691
  %694 = vrot.lane.b32.xlu0 %v692, 96
  %v695 = vpop.permute.xlu0 %694
  %v696 = vsel %vm52, %v695, 0
  %698 = vmatprep.subr.mxu0 0.0
  %699 = vmatpush1.msra.mxu0 0.0
  %700 = vmatprep.subr.mxu0 0.0
  %701 = vmatpush1.msra.mxu0 0.0
  %702 = vmatprep.subr.mxu0 0.0
  %703 = vmatpush1.msra.mxu0 0.0
  %704 = vmatprep.subr.mxu0 0.0
  %705 = vmatpush1.msra.mxu0 0.0
  %706 = vmatprep.subr.mxu0 0.0
  %707 = vmatpush1.msra.mxu0 0.0
  %708 = vmatprep.subr.mxu0 0.0
  %709 = vmatpush1.msra.mxu0 0.0
  %710 = vmatprep.subr.mxu0 0.0
  %711 = vmatpush1.msra.mxu0 0.0
  %712 = vmatprep.subr.mxu0 0.0
  %713 = vmatpush1.msra.mxu0 0.0
  %714 = vmatprep.subr.mxu0 0.0
  %715 = vmatpush1.msra.mxu0 0.0
  %716 = vmatprep.subr.mxu0 0.0
  %717 = vmatpush1.msra.mxu0 0.0
  %718 = vmatprep.subr.mxu0 0.0
  %719 = vmatpush1.msra.mxu0 0.0
  %720 = vmatprep.subr.mxu0 0.0
  %721 = vmatpush1.msra.mxu0 0.0
  %722 = vmatprep.subr.mxu0 0.0
  %723 = vmatpush1.msra.mxu0 %v185
  %724 = vmatprep.subr.mxu0 0.0
  %725 = vmatpush1.msra.mxu0 %v184
  %726 = vmatprep.subr.mxu0 0.0
  %727 = vmatpush1.msra.mxu0 %v183
  %728 = vmatprep.subr.mxu0 0.0
  %729 = vmatpush1.msra.mxu0 %v182
  %730 = vmatprep.subr.mxu0 0.0
  %731 = vmatpush2.msra.mxu0 0.0
  %732 = vmatprep.subr.mxu0 0.0
  %733 = vmatpush2.msra.mxu0 0.0
  %734 = vmatprep.subr.mxu0 0.0
  %735 = vmatpush2.msra.mxu0 0.0
  %736 = vmatprep.subr.mxu0 0.0
  %737 = vmatpush2.msra.mxu0 0.0
  %738 = vmatprep.subr.mxu0 0.0
  %739 = vmatpush2.msra.mxu0 0.0
  %740 = vmatprep.subr.mxu0 0.0
  %741 = vmatpush2.msra.mxu0 0.0
  %742 = vmatprep.subr.mxu0 0.0
  %743 = vmatpush2.msra.mxu0 0.0
  %744 = vmatprep.subr.mxu0 0.0
  %745 = vmatpush2.msra.mxu0 0.0
  %746 = vmatprep.subr.mxu0 0.0
  %747 = vmatpush2.msra.mxu0 0.0
  %748 = vmatprep.subr.mxu0 0.0
  %749 = vmatpush2.msra.mxu0 0.0
  %750 = vmatprep.subr.mxu0 0.0
  %751 = vmatpush2.msra.mxu0 0.0
  %752 = vmatprep.subr.mxu0 0.0
  %753 = vmatpush2.msra.mxu0 0.0
  %754 = vmatprep.subr.mxu0 0.0
  %755 = vmatpush2.msra.mxu0 0.0
  %756 = vmatprep.subr.mxu0 0.0
  %757 = vmatpush2.msra.mxu0 0.0
  %758 = vmatprep.subr.mxu0 0.0
  %759 = vmatpush2.msra.mxu0 0.0
  %760 = vmatprep.subr.mxu0 0.0
  %761 = vmatpush2.msra.mxu0 0.0
  %762 = vmatprep.mubr.f32.mxu0 0.0
  %763 = vmatmul.mubr.f32.gmra.mxu0 %v696
  %v764 = vpop.f32.mrf.mxu0
  %v765 = vadd.f32 %v189, %v764
  %v766 = vpop.f32.mrf.mxu0
  %767 = vdwg.mxu0
  %v768 = vadd.f32 %v169, %v765
  %v769 = vxor.u32 %v768, 2147483648
  %v770 = vmul.f32 %v769, 1.442695
  %v771 = vpow.pop %v770
  %v772 = vadd.f32 %v771, 1.0
  %v773 = vrcp.pop %v772
  %v774 = vmul.f32 1.0, %v773
  %776 = vrot.lane.b32.xlu0 %v765, 64
  %v777 = vpop.permute.xlu0 %776
  %v779 = vmul.f32 %v774, %v777
  %781 = vrot.lane.b32.xlu0 %v779, 64
  %v782 = vpop.permute.xlu0 %781
  %v784 = vadd.f32 %v169, %v782
  %v785 = vtanh.pop %v784
  %v786 = vsub.f32 1.0, %v774
  %788 = vrot.lane.b32.xlu0 %v785, 96
  %v789 = vpop.permute.xlu0 %788
  %v791 = vmul.f32 %v786, %v789
  %v792 = vmul.f32 %v774, %v692
  %v793 = vadd.f32 %v791, %v792
  %795 = vrot.lane.b32.xlu0 %v793, 96
  %v796 = vpop.permute.xlu0 %795
  %v797 = vsel %vm52, %v796, 0
  %799 = vmatprep.subr.mxu0 0.0
  %800 = vmatpush1.msra.mxu0 0.0
  %801 = vmatprep.subr.mxu0 0.0
  %802 = vmatpush1.msra.mxu0 0.0
  %803 = vmatprep.subr.mxu0 0.0
  %804 = vmatpush1.msra.mxu0 0.0
  %805 = vmatprep.subr.mxu0 0.0
  %806 = vmatpush1.msra.mxu0 0.0
  %807 = vmatprep.subr.mxu0 0.0
  %808 = vmatpush1.msra.mxu0 0.0
  %809 = vmatprep.subr.mxu0 0.0
  %810 = vmatpush1.msra.mxu0 0.0
  %811 = vmatprep.subr.mxu0 0.0
  %812 = vmatpush1.msra.mxu0 0.0
  %813 = vmatprep.subr.mxu0 0.0
  %814 = vmatpush1.msra.mxu0 0.0
  %815 = vmatprep.subr.mxu0 0.0
  %816 = vmatpush1.msra.mxu0 0.0
  %817 = vmatprep.subr.mxu0 0.0
  %818 = vmatpush1.msra.mxu0 0.0
  %819 = vmatprep.subr.mxu0 0.0
  %820 = vmatpush1.msra.mxu0 0.0
  %821 = vmatprep.subr.mxu0 0.0
  %822 = vmatpush1.msra.mxu0 0.0
  %823 = vmatprep.subr.mxu0 0.0
  %824 = vmatpush1.msra.mxu0 %v185
  %825 = vmatprep.subr.mxu0 0.0
  %826 = vmatpush1.msra.mxu0 %v184
  %827 = vmatprep.subr.mxu0 0.0
  %828 = vmatpush1.msra.mxu0 %v183
  %829 = vmatprep.subr.mxu0 0.0
  %830 = vmatpush1.msra.mxu0 %v182
  %831 = vmatprep.subr.mxu0 0.0
  %832 = vmatpush2.msra.mxu0 0.0
  %833 = vmatprep.subr.mxu0 0.0
  %834 = vmatpush2.msra.mxu0 0.0
  %835 = vmatprep.subr.mxu0 0.0
  %836 = vmatpush2.msra.mxu0 0.0
  %837 = vmatprep.subr.mxu0 0.0
  %838 = vmatpush2.msra.mxu0 0.0
  %839 = vmatprep.subr.mxu0 0.0
  %840 = vmatpush2.msra.mxu0 0.0
  %841 = vmatprep.subr.mxu0 0.0
  %842 = vmatpush2.msra.mxu0 0.0
  %843 = vmatprep.subr.mxu0 0.0
  %844 = vmatpush2.msra.mxu0 0.0
  %845 = vmatprep.subr.mxu0 0.0
  %846 = vmatpush2.msra.mxu0 0.0
  %847 = vmatprep.subr.mxu0 0.0
  %848 = vmatpush2.msra.mxu0 0.0
  %849 = vmatprep.subr.mxu0 0.0
  %850 = vmatpush2.msra.mxu0 0.0
  %851 = vmatprep.subr.mxu0 0.0
  %852 = vmatpush2.msra.mxu0 0.0
  %853 = vmatprep.subr.mxu0 0.0
  %854 = vmatpush2.msra.mxu0 0.0
  %855 = vmatprep.subr.mxu0 0.0
  %856 = vmatpush2.msra.mxu0 0.0
  %857 = vmatprep.subr.mxu0 0.0
  %858 = vmatpush2.msra.mxu0 0.0
  %859 = vmatprep.subr.mxu0 0.0
  %860 = vmatpush2.msra.mxu0 0.0
  %861 = vmatprep.subr.mxu0 0.0
  %862 = vmatpush2.msra.mxu0 0.0
  %863 = vmatprep.mubr.f32.mxu0 0.0
  %864 = vmatmul.mubr.f32.gmra.mxu0 %v797
  %v865 = vpop.f32.mrf.mxu0
  %v866 = vadd.f32 %v189, %v865
  %v867 = vpop.f32.mrf.mxu0
  %868 = vdwg.mxu0
  %v869 = vadd.f32 %v174, %v866
  %v870 = vxor.u32 %v869, 2147483648
  %v871 = vmul.f32 %v870, 1.442695
  %v872 = vpow.pop %v871
  %v873 = vadd.f32 %v872, 1.0
  %v874 = vrcp.pop %v873
  %v875 = vmul.f32 1.0, %v874
  %877 = vrot.lane.b32.xlu0 %v866, 64
  %v878 = vpop.permute.xlu0 %877
  %v880 = vmul.f32 %v875, %v878
  %882 = vrot.lane.b32.xlu0 %v880, 64
  %v883 = vpop.permute.xlu0 %882
  %v885 = vadd.f32 %v174, %v883
  %v886 = vtanh.pop %v885
  %v887 = vsub.f32 1.0, %v875
  %889 = vrot.lane.b32.xlu0 %v886, 96
  %v890 = vpop.permute.xlu0 %889
  %v892 = vmul.f32 %v887, %v890
  %v893 = vmul.f32 %v875, %v793
  %v894 = vadd.f32 %v892, %v893
  %896 = vrot.lane.b32.xlu0 %v894, 96
  %v897 = vpop.permute.xlu0 %896
  %v898 = vsel %vm52, %v897, 0
  %900 = vmatprep.subr.mxu0 0.0
  %901 = vmatpush1.msra.mxu0 0.0
  %902 = vmatprep.subr.mxu0 0.0
  %903 = vmatpush1.msra.mxu0 0.0
  %904 = vmatprep.subr.mxu0 0.0
  %905 = vmatpush1.msra.mxu0 0.0
  %906 = vmatprep.subr.mxu0 0.0
  %907 = vmatpush1.msra.mxu0 0.0
  %908 = vmatprep.subr.mxu0 0.0
  %909 = vmatpush1.msra.mxu0 0.0
  %910 = vmatprep.subr.mxu0 0.0
  %911 = vmatpush1.msra.mxu0 0.0
  %912 = vmatprep.subr.mxu0 0.0
  %913 = vmatpush1.msra.mxu0 0.0
  %914 = vmatprep.subr.mxu0 0.0
  %915 = vmatpush1.msra.mxu0 0.0
  %916 = vmatprep.subr.mxu0 0.0
  %917 = vmatpush1.msra.mxu0 0.0
  %918 = vmatprep.subr.mxu0 0.0
  %919 = vmatpush1.msra.mxu0 0.0
  %920 = vmatprep.subr.mxu0 0.0
  %921 = vmatpush1.msra.mxu0 0.0
  %922 = vmatprep.subr.mxu0 0.0
  %923 = vmatpush1.msra.mxu0 0.0
  %924 = vmatprep.subr.mxu0 0.0
  %925 = vmatpush1.msra.mxu0 %v185
  %926 = vmatprep.subr.mxu0 0.0
  %927 = vmatpush1.msra.mxu0 %v184
  %928 = vmatprep.subr.mxu0 0.0
  %929 = vmatpush1.msra.mxu0 %v183
  %930 = vmatprep.subr.mxu0 0.0
  %931 = vmatpush1.msra.mxu0 %v182
  %932 = vmatprep.subr.mxu0 0.0
  %933 = vmatpush2.msra.mxu0 0.0
  %934 = vmatprep.subr.mxu0 0.0
  %935 = vmatpush2.msra.mxu0 0.0
  %936 = vmatprep.subr.mxu0 0.0
  %937 = vmatpush2.msra.mxu0 0.0
  %938 = vmatprep.subr.mxu0 0.0
  %939 = vmatpush2.msra.mxu0 0.0
  %940 = vmatprep.subr.mxu0 0.0
  %941 = vmatpush2.msra.mxu0 0.0
  %942 = vmatprep.subr.mxu0 0.0
  %943 = vmatpush2.msra.mxu0 0.0
  %944 = vmatprep.subr.mxu0 0.0
  %945 = vmatpush2.msra.mxu0 0.0
  %946 = vmatprep.subr.mxu0 0.0
  %947 = vmatpush2.msra.mxu0 0.0
  %948 = vmatprep.subr.mxu0 0.0
  %949 = vmatpush2.msra.mxu0 0.0
  %950 = vmatprep.subr.mxu0 0.0
  %951 = vmatpush2.msra.mxu0 0.0
  %952 = vmatprep.subr.mxu0 0.0
  %953 = vmatpush2.msra.mxu0 0.0
  %954 = vmatprep.subr.mxu0 0.0
  %955 = vmatpush2.msra.mxu0 0.0
  %956 = vmatprep.subr.mxu0 0.0
  %957 = vmatpush2.msra.mxu0 0.0
  %958 = vmatprep.subr.mxu0 0.0
  %959 = vmatpush2.msra.mxu0 0.0
  %960 = vmatprep.subr.mxu0 0.0
  %961 = vmatpush2.msra.mxu0 0.0
  %962 = vmatprep.subr.mxu0 0.0
  %963 = vmatpush2.msra.mxu0 0.0
  %964 = vmatprep.mubr.f32.mxu0 0.0
  %965 = vmatmul.mubr.f32.gmra.mxu0 %v898
  %v966 = vpop.f32.mrf.mxu0
  %v967 = vadd.f32 %v189, %v966
  %v968 = vpop.f32.mrf.mxu0
  %969 = vdwg.mxu0
  %v970 = vadd.f32 %v179, %v967
  %v971 = vxor.u32 %v970, 2147483648
  %v972 = vmul.f32 %v971, 1.442695
  %v973 = vpow.pop %v972
  %v974 = vadd.f32 %v973, 1.0
  %v975 = vrcp.pop %v974
  %v976 = vmul.f32 1.0, %v975
  %978 = vrot.lane.b32.xlu0 %v967, 64
  %v979 = vpop.permute.xlu0 %978
  %v981 = vmul.f32 %v976, %v979
  %983 = vrot.lane.b32.xlu0 %v981, 64
  %v984 = vpop.permute.xlu0 %983
  %v986 = vadd.f32 %v179, %v984
  %v987 = vtanh.pop %v986
  %v988 = vsub.f32 1.0, %v976
  %990 = vrot.lane.b32.xlu0 %v987, 96
  %v991 = vpop.permute.xlu0 %990
  %v993 = vmul.f32 %v988, %v991
  %v994 = vmul.f32 %v976, %v894
  %v995 = vadd.f32 %v993, %v994
  %v996 = vld [vmem:[%s5] sm:$0xff]
  %v997 = vld [vmem:[%s5 + $0x8] sm:$0xff]
  %v998 = vld [vmem:[%s5 + $0x10] sm:$0xff]
  %v999 = vld [vmem:[%s5 + $0x18] sm:$0xff]
  %v1000 = vtanh.pop %v996
  %v1001 = vtanh.pop %v997
  %v1002 = vtanh.pop %v998
  %v1003 = vtanh.pop %v999
  %1008 = vrot.lane.b32.xlu0 %v1000, 96
  %v1009 = vpop.permute.xlu0 %1008
  %1010 = vrot.lane.b32.xlu0 %v1001, 96
  %v1011 = vpop.permute.xlu0 %1010
  %1012 = vrot.lane.b32.xlu0 %v1002, 96
  %v1013 = vpop.permute.xlu0 %1012
  %1014 = vrot.lane.b32.xlu0 %v1003, 96
  %v1015 = vpop.permute.xlu0 %1014
  %v1021 = vsel %vm52, %v996, 0
  %v1024 = vsel %vm52, %v997, 0
  %v1027 = vsel %vm52, %v998, 0
  %v1030 = vsel %vm52, %v999, 0
  %1032 = vmatprep.subr.mxu0 0.0
  %1033 = vmatpush1.msra.mxu0 0.0
  %1034 = vmatprep.subr.mxu0 0.0
  %1035 = vmatpush1.msra.mxu0 0.0
  %1036 = vmatprep.subr.mxu0 0.0
  %1037 = vmatpush1.msra.mxu0 0.0
  %1038 = vmatprep.subr.mxu0 0.0
  %1039 = vmatpush1.msra.mxu0 0.0
  %1040 = vmatprep.subr.mxu0 0.0
  %1041 = vmatpush1.msra.mxu0 0.0
  %1042 = vmatprep.subr.mxu0 0.0
  %1043 = vmatpush1.msra.mxu0 0.0
  %1044 = vmatprep.subr.mxu0 0.0
  %1045 = vmatpush1.msra.mxu0 0.0
  %1046 = vmatprep.subr.mxu0 0.0
  %1047 = vmatpush1.msra.mxu0 0.0
  %1048 = vmatprep.subr.mxu0 0.0
  %1049 = vmatpush1.msra.mxu0 0.0
  %1050 = vmatprep.subr.mxu0 0.0
  %1051 = vmatpush1.msra.mxu0 0.0
  %1052 = vmatprep.subr.mxu0 0.0
  %1053 = vmatpush1.msra.mxu0 0.0
  %1054 = vmatprep.subr.mxu0 0.0
  %1055 = vmatpush1.msra.mxu0 0.0
  %1056 = vmatprep.subr.mxu0 0.0
  %1057 = vmatpush1.msra.mxu0 %v1015
  %1058 = vmatprep.subr.mxu0 0.0
  %1059 = vmatpush1.msra.mxu0 %v1013
  %1060 = vmatprep.subr.mxu0 0.0
  %1061 = vmatpush1.msra.mxu0 %v1011
  %1062 = vmatprep.subr.mxu0 0.0
  %1063 = vmatpush1.msra.mxu0 %v1009
  %1064 = vmatprep.subr.mxu0 0.0
  %1065 = vmatpush2.msra.mxu0 0.0
  %1066 = vmatprep.subr.mxu0 0.0
  %1067 = vmatpush2.msra.mxu0 0.0
  %1068 = vmatprep.subr.mxu0 0.0
  %1069 = vmatpush2.msra.mxu0 0.0
  %1070 = vmatprep.subr.mxu0 0.0
  %1071 = vmatpush2.msra.mxu0 0.0
  %1072 = vmatprep.subr.mxu0 0.0
  %1073 = vmatpush2.msra.mxu0 0.0
  %1074 = vmatprep.subr.mxu0 0.0
  %1075 = vmatpush2.msra.mxu0 0.0
  %1076 = vmatprep.subr.mxu0 0.0
  %1077 = vmatpush2.msra.mxu0 0.0
  %1078 = vmatprep.subr.mxu0 0.0
  %1079 = vmatpush2.msra.mxu0 0.0
  %1080 = vmatprep.subr.mxu0 0.0
  %1081 = vmatpush2.msra.mxu0 0.0
  %1082 = vmatprep.subr.mxu0 0.0
  %1083 = vmatpush2.msra.mxu0 0.0
  %1084 = vmatprep.subr.mxu0 0.0
  %1085 = vmatpush2.msra.mxu0 0.0
  %1086 = vmatprep.subr.mxu0 0.0
  %1087 = vmatpush2.msra.mxu0 0.0
  %1088 = vmatprep.subr.mxu0 0.0
  %1089 = vmatpush2.msra.mxu0 0.0
  %1090 = vmatprep.subr.mxu0 0.0
  %1091 = vmatpush2.msra.mxu0 0.0
  %1092 = vmatprep.subr.mxu0 0.0
  %1093 = vmatpush2.msra.mxu0 0.0
  %1094 = vmatprep.subr.mxu0 0.0
  %1095 = vmatpush2.msra.mxu0 0.0
  %1096 = vmatprep.mubr.f32.mxu0 0.0
  %1097 = vmatmul.mubr.f32.gmra.mxu0 %v1021
  %v1098 = vpop.f32.mrf.mxu0
  %v1099 = vadd.f32 0.0, %v1098
  %v1100 = vpop.f32.mrf.mxu0
  %1101 = vmatprep.mubr.f32.mxu0 0.0
  %1102 = vmatmul.mubr.f32.gmra.mxu0 %v1024
  %v1103 = vpop.f32.mrf.mxu0
  %v1104 = vadd.f32 0.0, %v1103
  %v1105 = vpop.f32.mrf.mxu0
  %1106 = vmatprep.mubr.f32.mxu0 0.0
  %1107 = vmatmul.mubr.f32.gmra.mxu0 %v1027
  %v1108 = vpop.f32.mrf.mxu0
  %v1109 = vadd.f32 0.0, %v1108
  %v1110 = vpop.f32.mrf.mxu0
  %1111 = vmatprep.mubr.f32.mxu0 0.0
  %1112 = vmatmul.mubr.f32.gmra.mxu0 %v1030
  %v1113 = vpop.f32.mrf.mxu0
  %v1114 = vadd.f32 0.0, %v1113
  %v1115 = vpop.f32.mrf.mxu0
  %1116 = vdwg.mxu0
  %v1117 = vtanh.pop %v1099
  %v1118 = vtanh.pop %v1104
  %v1119 = vtanh.pop %v1109
  %v1120 = vtanh.pop %v1114
  %1122 = vrot.lane.b32.xlu0 %v995, 96
  %v1123 = vpop.permute.xlu0 %1122
  %v1124 = vsel %vm52, %v1123, 0
  %1126 = vmatprep.subr.mxu0 0.0
  %1127 = vmatpush1.msra.mxu0 0.0
  %1128 = vmatprep.subr.mxu0 0.0
  %1129 = vmatpush1.msra.mxu0 0.0
  %1130 = vmatprep.subr.mxu0 0.0
  %1131 = vmatpush1.msra.mxu0 0.0
  %1132 = vmatprep.subr.mxu0 0.0
  %1133 = vmatpush1.msra.mxu0 0.0
  %1134 = vmatprep.subr.mxu0 0.0
  %1135 = vmatpush1.msra.mxu0 0.0
  %1136 = vmatprep.subr.mxu0 0.0
  %1137 = vmatpush1.msra.mxu0 0.0
  %1138 = vmatprep.subr.mxu0 0.0
  %1139 = vmatpush1.msra.mxu0 0.0
  %1140 = vmatprep.subr.mxu0 0.0
  %1141 = vmatpush1.msra.mxu0 0.0
  %1142 = vmatprep.subr.mxu0 0.0
  %1143 = vmatpush1.msra.mxu0 0.0
  %1144 = vmatprep.subr.mxu0 0.0
  %1145 = vmatpush1.msra.mxu0 0.0
  %1146 = vmatprep.subr.mxu0 0.0
  %1147 = vmatpush1.msra.mxu0 0.0
  %1148 = vmatprep.subr.mxu0 0.0
  %1149 = vmatpush1.msra.mxu0 0.0
  %1150 = vmatprep.subr.mxu0 0.0
  %1151 = vmatpush1.msra.mxu0 %v1120
  %1152 = vmatprep.subr.mxu0 0.0
  %1153 = vmatpush1.msra.mxu0 %v1119
  %1154 = vmatprep.subr.mxu0 0.0
  %1155 = vmatpush1.msra.mxu0 %v1118
  %1156 = vmatprep.subr.mxu0 0.0
  %1157 = vmatpush1.msra.mxu0 %v1117
  %1158 = vmatprep.subr.mxu0 0.0
  %1159 = vmatpush2.msra.mxu0 0.0
  %1160 = vmatprep.subr.mxu0 0.0
  %1161 = vmatpush2.msra.mxu0 0.0
  %1162 = vmatprep.subr.mxu0 0.0
  %1163 = vmatpush2.msra.mxu0 0.0
  %1164 = vmatprep.subr.mxu0 0.0
  %1165 = vmatpush2.msra.mxu0 0.0
  %1166 = vmatprep.subr.mxu0 0.0
  %1167 = vmatpush2.msra.mxu0 0.0
  %1168 = vmatprep.subr.mxu0 0.0
  %1169 = vmatpush2.msra.mxu0 0.0
  %1170 = vmatprep.subr.mxu0 0.0
  %1171 = vmatpush2.msra.mxu0 0.0
  %1172 = vmatprep.subr.mxu0 0.0
  %1173 = vmatpush2.msra.mxu0 0.0
  %1174 = vmatprep.subr.mxu0 0.0
  %1175 = vmatpush2.msra.mxu0 0.0
  %1176 = vmatprep.subr.mxu0 0.0
  %1177 = vmatpush2.msra.mxu0 0.0
  %1178 = vmatprep.subr.mxu0 0.0
  %1179 = vmatpush2.msra.mxu0 0.0
  %1180 = vmatprep.subr.mxu0 0.0
  %1181 = vmatpush2.msra.mxu0 0.0
  %1182 = vmatprep.subr.mxu0 0.0
  %1183 = vmatpush2.msra.mxu0 0.0
  %1184 = vmatprep.subr.mxu0 0.0
  %1185 = vmatpush2.msra.mxu0 0.0
  %1186 = vmatprep.subr.mxu0 0.0
  %1187 = vmatpush2.msra.mxu0 0.0
  %1188 = vmatprep.subr.mxu0 0.0
  %1189 = vmatpush2.msra.mxu0 0.0
  %1190 = vmatprep.mubr.f32.mxu0 0.0
  %1191 = vmatmul.mubr.f32.gmra.mxu0 %v292
  %v1192 = vpop.f32.mrf.mxu0
  %v1193 = vadd.f32 0.0, %v1192
  %v1194 = vpop.f32.mrf.mxu0
  %1195 = vmatprep.mubr.f32.mxu0 0.0
  %1196 = vmatmul.mubr.f32.gmra.mxu0 %v393
  %v1197 = vpop.f32.mrf.mxu0
  %v1198 = vadd.f32 0.0, %v1197
  %v1199 = vpop.f32.mrf.mxu0
  %1200 = vmatprep.mubr.f32.mxu0 0.0
  %1201 = vmatmul.mubr.f32.gmra.mxu0 %v494
  %v1202 = vpop.f32.mrf.mxu0
  %v1203 = vadd.f32 0.0, %v1202
  %v1204 = vpop.f32.mrf.mxu0
  %1205 = vmatprep.mubr.f32.mxu0 0.0
  %1206 = vmatmul.mubr.f32.gmra.mxu0 %v595
  %v1207 = vpop.f32.mrf.mxu0
  %v1208 = vadd.f32 0.0, %v1207
  %v1209 = vpop.f32.mrf.mxu0
  %1210 = vmatprep.mubr.f32.mxu0 0.0
  %1211 = vmatmul.mubr.f32.gmra.mxu0 %v696
  %v1212 = vpop.f32.mrf.mxu0
  %v1213 = vadd.f32 0.0, %v1212
  %v1214 = vpop.f32.mrf.mxu0
  %1215 = vmatprep.mubr.f32.mxu0 0.0
  %1216 = vmatmul.mubr.f32.gmra.mxu0 %v797
  %v1217 = vpop.f32.mrf.mxu0
  %v1218 = vadd.f32 0.0, %v1217
  %v1219 = vpop.f32.mrf.mxu0
  %1220 = vmatprep.mubr.f32.mxu0 0.0
  %1221 = vmatmul.mubr.f32.gmra.mxu0 %v898
  %v1222 = vpop.f32.mrf.mxu0
  %v1223 = vadd.f32 0.0, %v1222
  %v1224 = vpop.f32.mrf.mxu0
  %1225 = vmatprep.mubr.f32.mxu0 0.0
  %1226 = vmatmul.mubr.f32.gmra.mxu0 %v1124
  %v1227 = vpop.f32.mrf.mxu0
  %v1228 = vadd.f32 0.0, %v1227
  %v1229 = vpop.f32.mrf.mxu0
  %1230 = vdwg.mxu0
  %v1231 = vld [vmem:[%s1] sm:$0xff]
  %v1232 = vld [vmem:[%s1 + $0x8] sm:$0xff]
  %v1233 = vld [vmem:[%s1 + $0x10] sm:$0xff]
  %v1234 = vld [vmem:[%s1 + $0x18] sm:$0xff]
  %v1235 = vld [vmem:[%s1 + $0x20] sm:$0xff]
  %v1236 = vld [vmem:[%s1 + $0x28] sm:$0xff]
  %v1237 = vld [vmem:[%s1 + $0x30] sm:$0xff]
  %v1238 = vld [vmem:[%s1 + $0x38] sm:$0xff]
  %1240 = vset.pattern.permute.xlu0 0
  %1241 = vperm.xlu0 %1240, %v1231
  %v1242 = vpop.permute.xlu0 %1241
  %1245 = vset.pattern.permute.xlu0 0
  %1246 = vperm.xlu0 %1245, %v1232
  %v1247 = vpop.permute.xlu0 %1246
  %1250 = vset.pattern.permute.xlu0 0
  %1251 = vperm.xlu0 %1250, %v1233
  %v1252 = vpop.permute.xlu0 %1251
  %1255 = vset.pattern.permute.xlu0 0
  %1256 = vperm.xlu0 %1255, %v1234
  %v1257 = vpop.permute.xlu0 %1256
  %1260 = vset.pattern.permute.xlu0 0
  %1261 = vperm.xlu0 %1260, %v1235
  %v1262 = vpop.permute.xlu0 %1261
  %1265 = vset.pattern.permute.xlu0 0
  %1266 = vperm.xlu0 %1265, %v1236
  %v1267 = vpop.permute.xlu0 %1266
  %1270 = vset.pattern.permute.xlu0 0
  %1271 = vperm.xlu0 %1270, %v1237
  %v1272 = vpop.permute.xlu0 %1271
  %1275 = vset.pattern.permute.xlu0 0
  %1276 = vperm.xlu0 %1275, %v1238
  %v1277 = vpop.permute.xlu0 %1276
  %v1279 = vmul.f32 %v1193, %v1242
  %v1280 = vmul.f32 %v1198, %v1247
  %v1281 = vmul.f32 %v1203, %v1252
  %v1282 = vmul.f32 %v1208, %v1257
  %v1283 = vmul.f32 %v1213, %v1262
  %v1284 = vmul.f32 %v1218, %v1267
  %v1285 = vmul.f32 %v1223, %v1272
  %v1286 = vmul.f32 %v1228, %v1277
  %v1287 = vtanh.pop %v1279
  %v1288 = vtanh.pop %v1280
  %v1289 = vtanh.pop %v1281
  %v1290 = vtanh.pop %v1282
  %v1291 = vtanh.pop %v1283
  %v1292 = vtanh.pop %v1284
  %v1293 = vtanh.pop %v1285
  %v1294 = vtanh.pop %v1286
  %1296 = vset.pattern.permute.xlu0 0
  %1297 = vperm.xlu0 %1296, %v1287
  %v1298 = vpop.permute.xlu0 %1297
  %1301 = vset.pattern.permute.xlu0 0
  %1302 = vperm.xlu0 %1301, %v1288
  %v1303 = vpop.permute.xlu0 %1302
  %1306 = vset.pattern.permute.xlu0 0
  %1307 = vperm.xlu0 %1306, %v1289
  %v1308 = vpop.permute.xlu0 %1307
  %1311 = vset.pattern.permute.xlu0 0
  %1312 = vperm.xlu0 %1311, %v1290
  %v1313 = vpop.permute.xlu0 %1312
  %1316 = vset.pattern.permute.xlu0 0
  %1317 = vperm.xlu0 %1316, %v1291
  %v1318 = vpop.permute.xlu0 %1317
  %1321 = vset.pattern.permute.xlu0 0
  %1322 = vperm.xlu0 %1321, %v1292
  %v1323 = vpop.permute.xlu0 %1322
  %1326 = vset.pattern.permute.xlu0 0
  %1327 = vperm.xlu0 %1326, %v1293
  %v1328 = vpop.permute.xlu0 %1327
  %1331 = vset.pattern.permute.xlu0 0
  %1332 = vperm.xlu0 %1331, %v1294
  %v1333 = vpop.permute.xlu0 %1332
  %v1335 = vmul.f32 %v1298, %v288
  %v1336 = vmul.f32 %v1303, %v389
  %v1337 = vmul.f32 %v1308, %v490
  %v1338 = vmul.f32 %v1313, %v591
  %v1339 = vmul.f32 %v1318, %v692
  %v1340 = vmul.f32 %v1323, %v793
  %v1341 = vmul.f32 %v1328, %v894
  %v1342 = vmul.f32 %v1333, %v995
  %vm1343 = vcmask 523520
  %v1344 = vsel %vm1343, %v1335, 0.0
  %v1345 = vsel %vm1343, %v1336, 0.0
  %v1346 = vadd.f32 %v1344, %v1345
  %v1347 = vsel %vm1343, %v1337, 0.0
  %v1348 = vadd.f32 %v1346, %v1347
  %v1349 = vsel %vm1343, %v1338, 0.0
  %v1350 = vadd.f32 %v1348, %v1349
  %v1351 = vsel %vm1343, %v1339, 0.0
  %v1352 = vadd.f32 %v1350, %v1351
  %v1353 = vsel %vm1343, %v1340, 0.0
  %v1354 = vadd.f32 %v1352, %v1353
  %v1355 = vsel %vm1343, %v1341, 0.0
  %v1356 = vadd.f32 %v1354, %v1355
  %v1357 = vsel %vm1343, %v1342, 0.0
  %v1358 = vadd.f32 %v1356, %v1357
  %1359 = vset.pattern.permute.xlu0 1
  %1360 = vperm.xlu0 %1359, %v1287
  %v1361 = vpop.permute.xlu0 %1360
  %1363 = vset.pattern.permute.xlu0 1
  %1364 = vperm.xlu0 %1363, %v1288
  %v1365 = vpop.permute.xlu0 %1364
  %1367 = vset.pattern.permute.xlu0 1
  %1368 = vperm.xlu0 %1367, %v1289
  %v1369 = vpop.permute.xlu0 %1368
  %1371 = vset.pattern.permute.xlu0 1
  %1372 = vperm.xlu0 %1371, %v1290
  %v1373 = vpop.permute.xlu0 %1372
  %1375 = vset.pattern.permute.xlu0 1
  %1376 = vperm.xlu0 %1375, %v1291
  %v1377 = vpop.permute.xlu0 %1376
  %1379 = vset.pattern.permute.xlu0 1
  %1380 = vperm.xlu0 %1379, %v1292
  %v1381 = vpop.permute.xlu0 %1380
  %1383 = vset.pattern.permute.xlu0 1
  %1384 = vperm.xlu0 %1383, %v1293
  %v1385 = vpop.permute.xlu0 %1384
  %1387 = vset.pattern.permute.xlu0 1
  %1388 = vperm.xlu0 %1387, %v1294
  %v1389 = vpop.permute.xlu0 %1388
  %v1391 = vmul.f32 %v1361, %v288
  %v1392 = vmul.f32 %v1365, %v389
  %v1393 = vmul.f32 %v1369, %v490
  %v1394 = vmul.f32 %v1373, %v591
  %v1395 = vmul.f32 %v1377, %v692
  %v1396 = vmul.f32 %v1381, %v793
  %v1397 = vmul.f32 %v1385, %v894
  %v1398 = vmul.f32 %v1389, %v995
  %v1399 = vsel %vm1343, %v1391, 0.0
  %v1400 = vsel %vm1343, %v1392, 0.0
  %v1401 = vadd.f32 %v1399, %v1400
  %v1402 = vsel %vm1343, %v1393, 0.0
  %v1403 = vadd.f32 %v1401, %v1402
  %v1404 = vsel %vm1343, %v1394, 0.0
  %v1405 = vadd.f32 %v1403, %v1404
  %v1406 = vsel %vm1343, %v1395, 0.0
  %v1407 = vadd.f32 %v1405, %v1406
  %v1408 = vsel %vm1343, %v1396, 0.0
  %v1409 = vadd.f32 %v1407, %v1408
  %v1410 = vsel %vm1343, %v1397, 0.0
  %v1411 = vadd.f32 %v1409, %v1410
  %v1412 = vsel %vm1343, %v1398, 0.0
  %v1413 = vadd.f32 %v1411, %v1412
  %1414 = vset.pattern.permute.xlu0 2
  %1415 = vperm.xlu0 %1414, %v1287
  %v1416 = vpop.permute.xlu0 %1415
  %1418 = vset.pattern.permute.xlu0 2
  %1419 = vperm.xlu0 %1418, %v1288
  %v1420 = vpop.permute.xlu0 %1419
  %1422 = vset.pattern.permute.xlu0 2
  %1423 = vperm.xlu0 %1422, %v1289
  %v1424 = vpop.permute.xlu0 %1423
  %1426 = vset.pattern.permute.xlu0 2
  %1427 = vperm.xlu0 %1426, %v1290
  %v1428 = vpop.permute.xlu0 %1427
  %1430 = vset.pattern.permute.xlu0 2
  %1431 = vperm.xlu0 %1430, %v1291
  %v1432 = vpop.permute.xlu0 %1431
  %1434 = vset.pattern.permute.xlu0 2
  %1435 = vperm.xlu0 %1434, %v1292
  %v1436 = vpop.permute.xlu0 %1435
  %1438 = vset.pattern.permute.xlu0 2
  %1439 = vperm.xlu0 %1438, %v1293
  %v1440 = vpop.permute.xlu0 %1439
  %1442 = vset.pattern.permute.xlu0 2
  %1443 = vperm.xlu0 %1442, %v1294
  %v1444 = vpop.permute.xlu0 %1443
  %v1446 = vmul.f32 %v1416, %v288
  %v1447 = vmul.f32 %v1420, %v389
  %v1448 = vmul.f32 %v1424, %v490
  %v1449 = vmul.f32 %v1428, %v591
  %v1450 = vmul.f32 %v1432, %v692
  %v1451 = vmul.f32 %v1436, %v793
  %v1452 = vmul.f32 %v1440, %v894
  %v1453 = vmul.f32 %v1444, %v995
  %v1454 = vsel %vm1343, %v1446, 0.0
  %v1455 = vsel %vm1343, %v1447, 0.0
  %v1456 = vadd.f32 %v1454, %v1455
  %v1457 = vsel %vm1343, %v1448, 0.0
  %v1458 = vadd.f32 %v1456, %v1457
  %v1459 = vsel %vm1343, %v1449, 0.0
  %v1460 = vadd.f32 %v1458, %v1459
  %v1461 = vsel %vm1343, %v1450, 0.0
  %v1462 = vadd.f32 %v1460, %v1461
  %v1463 = vsel %vm1343, %v1451, 0.0
  %v1464 = vadd.f32 %v1462, %v1463
  %v1465 = vsel %vm1343, %v1452, 0.0
  %v1466 = vadd.f32 %v1464, %v1465
  %v1467 = vsel %vm1343, %v1453, 0.0
  %v1468 = vadd.f32 %v1466, %v1467
  %1469 = vset.pattern.permute.xlu0 3
  %1470 = vperm.xlu0 %1469, %v1287
  %v1471 = vpop.permute.xlu0 %1470
  %1473 = vset.pattern.permute.xlu0 3
  %1474 = vperm.xlu0 %1473, %v1288
  %v1475 = vpop.permute.xlu0 %1474
  %1477 = vset.pattern.permute.xlu0 3
  %1478 = vperm.xlu0 %1477, %v1289
  %v1479 = vpop.permute.xlu0 %1478
  %1481 = vset.pattern.permute.xlu0 3
  %1482 = vperm.xlu0 %1481, %v1290
  %v1483 = vpop.permute.xlu0 %1482
  %1485 = vset.pattern.permute.xlu0 3
  %1486 = vperm.xlu0 %1485, %v1291
  %v1487 = vpop.permute.xlu0 %1486
  %1489 = vset.pattern.permute.xlu0 3
  %1490 = vperm.xlu0 %1489, %v1292
  %v1491 = vpop.permute.xlu0 %1490
  %1493 = vset.pattern.permute.xlu0 3
  %1494 = vperm.xlu0 %1493, %v1293
  %v1495 = vpop.permute.xlu0 %1494
  %1497 = vset.pattern.permute.xlu0 3
  %1498 = vperm.xlu0 %1497, %v1294
  %v1499 = vpop.permute.xlu0 %1498
  %v1501 = vmul.f32 %v1471, %v288
  %v1502 = vmul.f32 %v1475, %v389
  %v1503 = vmul.f32 %v1479, %v490
  %v1504 = vmul.f32 %v1483, %v591
  %v1505 = vmul.f32 %v1487, %v692
  %v1506 = vmul.f32 %v1491, %v793
  %v1507 = vmul.f32 %v1495, %v894
  %v1508 = vmul.f32 %v1499, %v995
  %v1509 = vsel %vm1343, %v1501, 0.0
  %v1510 = vsel %vm1343, %v1502, 0.0
  %v1511 = vadd.f32 %v1509, %v1510
  %v1512 = vsel %vm1343, %v1503, 0.0
  %v1513 = vadd.f32 %v1511, %v1512
  %v1514 = vsel %vm1343, %v1504, 0.0
  %v1515 = vadd.f32 %v1513, %v1514
  %v1516 = vsel %vm1343, %v1505, 0.0
  %v1517 = vadd.f32 %v1515, %v1516
  %v1518 = vsel %vm1343, %v1506, 0.0
  %v1519 = vadd.f32 %v1517, %v1518
  %v1520 = vsel %vm1343, %v1507, 0.0
  %v1521 = vadd.f32 %v1519, %v1520
  %v1522 = vsel %vm1343, %v1508, 0.0
  %v1523 = vadd.f32 %v1521, %v1522
  %1524 = vset.pattern.permute.xlu0 4
  %1525 = vperm.xlu0 %1524, %v1287
  %v1526 = vpop.permute.xlu0 %1525
  %1528 = vset.pattern.permute.xlu0 4
  %1529 = vperm.xlu0 %1528, %v1288
  %v1530 = vpop.permute.xlu0 %1529
  %1532 = vset.pattern.permute.xlu0 4
  %1533 = vperm.xlu0 %1532, %v1289
  %v1534 = vpop.permute.xlu0 %1533
  %1536 = vset.pattern.permute.xlu0 4
  %1537 = vperm.xlu0 %1536, %v1290
  %v1538 = vpop.permute.xlu0 %1537
  %1540 = vset.pattern.permute.xlu0 4
  %1541 = vperm.xlu0 %1540, %v1291
  %v1542 = vpop.permute.xlu0 %1541
  %1544 = vset.pattern.permute.xlu0 4
  %1545 = vperm.xlu0 %1544, %v1292
  %v1546 = vpop.permute.xlu0 %1545
  %1548 = vset.pattern.permute.xlu0 4
  %1549 = vperm.xlu0 %1548, %v1293
  %v1550 = vpop.permute.xlu0 %1549
  %1552 = vset.pattern.permute.xlu0 4
  %1553 = vperm.xlu0 %1552, %v1294
  %v1554 = vpop.permute.xlu0 %1553
  %v1556 = vmul.f32 %v1526, %v288
  %v1557 = vmul.f32 %v1530, %v389
  %v1558 = vmul.f32 %v1534, %v490
  %v1559 = vmul.f32 %v1538, %v591
  %v1560 = vmul.f32 %v1542, %v692
  %v1561 = vmul.f32 %v1546, %v793
  %v1562 = vmul.f32 %v1550, %v894
  %v1563 = vmul.f32 %v1554, %v995
  %v1564 = vsel %vm1343, %v1556, 0.0
  %v1565 = vsel %vm1343, %v1557, 0.0
  %v1566 = vadd.f32 %v1564, %v1565
  %v1567 = vsel %vm1343, %v1558, 0.0
  %v1568 = vadd.f32 %v1566, %v1567
  %v1569 = vsel %vm1343, %v1559, 0.0
  %v1570 = vadd.f32 %v1568, %v1569
  %v1571 = vsel %vm1343, %v1560, 0.0
  %v1572 = vadd.f32 %v1570, %v1571
  %v1573 = vsel %vm1343, %v1561, 0.0
  %v1574 = vadd.f32 %v1572, %v1573
  %v1575 = vsel %vm1343, %v1562, 0.0
  %v1576 = vadd.f32 %v1574, %v1575
  %v1577 = vsel %vm1343, %v1563, 0.0
  %v1578 = vadd.f32 %v1576, %v1577
  %1579 = vset.pattern.permute.xlu0 5
  %1580 = vperm.xlu0 %1579, %v1287
  %v1581 = vpop.permute.xlu0 %1580
  %1583 = vset.pattern.permute.xlu0 5
  %1584 = vperm.xlu0 %1583, %v1288
  %v1585 = vpop.permute.xlu0 %1584
  %1587 = vset.pattern.permute.xlu0 5
  %1588 = vperm.xlu0 %1587, %v1289
  %v1589 = vpop.permute.xlu0 %1588
  %1591 = vset.pattern.permute.xlu0 5
  %1592 = vperm.xlu0 %1591, %v1290
  %v1593 = vpop.permute.xlu0 %1592
  %1595 = vset.pattern.permute.xlu0 5
  %1596 = vperm.xlu0 %1595, %v1291
  %v1597 = vpop.permute.xlu0 %1596
  %1599 = vset.pattern.permute.xlu0 5
  %1600 = vperm.xlu0 %1599, %v1292
  %v1601 = vpop.permute.xlu0 %1600
  %1603 = vset.pattern.permute.xlu0 5
  %1604 = vperm.xlu0 %1603, %v1293
  %v1605 = vpop.permute.xlu0 %1604
  %1607 = vset.pattern.permute.xlu0 5
  %1608 = vperm.xlu0 %1607, %v1294
  %v1609 = vpop.permute.xlu0 %1608
  %v1611 = vmul.f32 %v1581, %v288
  %v1612 = vmul.f32 %v1585, %v389
  %v1613 = vmul.f32 %v1589, %v490
  %v1614 = vmul.f32 %v1593, %v591
  %v1615 = vmul.f32 %v1597, %v692
  %v1616 = vmul.f32 %v1601, %v793
  %v1617 = vmul.f32 %v1605, %v894
  %v1618 = vmul.f32 %v1609, %v995
  %v1619 = vsel %vm1343, %v1611, 0.0
  %v1620 = vsel %vm1343, %v1612, 0.0
  %v1621 = vadd.f32 %v1619, %v1620
  %v1622 = vsel %vm1343, %v1613, 0.0
  %v1623 = vadd.f32 %v1621, %v1622
  %v1624 = vsel %vm1343, %v1614, 0.0
  %v1625 = vadd.f32 %v1623, %v1624
  %v1626 = vsel %vm1343, %v1615, 0.0
  %v1627 = vadd.f32 %v1625, %v1626
  %v1628 = vsel %vm1343, %v1616, 0.0
  %v1629 = vadd.f32 %v1627, %v1628
  %v1630 = vsel %vm1343, %v1617, 0.0
  %v1631 = vadd.f32 %v1629, %v1630
  %v1632 = vsel %vm1343, %v1618, 0.0
  %v1633 = vadd.f32 %v1631, %v1632
  %v1634 = vld [vmem:[%s6] sm:$0xff]
  %v1635 = vld [vmem:[%s6 + $0x8] sm:$0xff]
  %v1636 = vld [vmem:[%s6 + $0x10] sm:$0xff]
  %v1637 = vld [vmem:[%s6 + $0x18] sm:$0xff]
  %v1638 = vld [vmem:[%s6 + $0x20] sm:$0x1]
  %v1639 = vtanh.pop %v1358
  %v1640 = vtanh.pop %v1413
  %v1641 = vtanh.pop %v1468
  %v1642 = vtanh.pop %v1523
  %v1643 = vtanh.pop %v1578
  %v1644 = vtanh.pop %v1633
  %v1645 = vlaneseq
  %v1646 = vshrl.u32 %v1645, 7
  %v1647 = vsub.s32 0, %v1646
  %v1648 = vrot.slane %v1638, %v1647
  %1655 = vrot.lane.b32.xlu0 %v1639, 96
  %v1656 = vpop.permute.xlu0 %1655
  %1657 = vrot.lane.b32.xlu0 %v1640, 96
  %v1658 = vpop.permute.xlu0 %1657
  %1659 = vrot.lane.b32.xlu0 %v1641, 96
  %v1660 = vpop.permute.xlu0 %1659
  %1661 = vrot.lane.b32.xlu0 %v1642, 96
  %v1662 = vpop.permute.xlu0 %1661
  %1663 = vrot.lane.b32.xlu0 %v1643, 96
  %v1664 = vpop.permute.xlu0 %1663
  %1665 = vrot.lane.b32.xlu0 %v1644, 96
  %v1666 = vpop.permute.xlu0 %1665
  %v1667 = vsel %vm52, %v1656, 0
  %v1669 = vsel %vm52, %v1658, 0
  %v1671 = vsel %vm52, %v1660, 0
  %v1673 = vsel %vm52, %v1662, 0
  %v1675 = vsel %vm52, %v1664, 0
  %v1677 = vsel %vm52, %v1666, 0
  %1679 = vmatprep.subr.mxu0 0.0
  %1680 = vmatpush1.msra.mxu0 0.0
  %1681 = vmatprep.subr.mxu0 0.0
  %1682 = vmatpush1.msra.mxu0 0.0
  %1683 = vmatprep.subr.mxu0 0.0
  %1684 = vmatpush1.msra.mxu0 0.0
  %1685 = vmatprep.subr.mxu0 0.0
  %1686 = vmatpush1.msra.mxu0 0.0
  %1687 = vmatprep.subr.mxu0 0.0
  %1688 = vmatpush1.msra.mxu0 0.0
  %1689 = vmatprep.subr.mxu0 0.0
  %1690 = vmatpush1.msra.mxu0 0.0
  %1691 = vmatprep.subr.mxu0 0.0
  %1692 = vmatpush1.msra.mxu0 0.0
  %1693 = vmatprep.subr.mxu0 0.0
  %1694 = vmatpush1.msra.mxu0 0.0
  %1695 = vmatprep.subr.mxu0 0.0
  %1696 = vmatpush1.msra.mxu0 0.0
  %1697 = vmatprep.subr.mxu0 0.0
  %1698 = vmatpush1.msra.mxu0 0.0
  %1699 = vmatprep.subr.mxu0 0.0
  %1700 = vmatpush1.msra.mxu0 0.0
  %1701 = vmatprep.subr.mxu0 0.0
  %1702 = vmatpush1.msra.mxu0 0.0
  %1703 = vmatprep.subr.mxu0 0.0
  %1704 = vmatpush1.msra.mxu0 %v1637
  %1705 = vmatprep.subr.mxu0 0.0
  %1706 = vmatpush1.msra.mxu0 %v1636
  %1707 = vmatprep.subr.mxu0 0.0
  %1708 = vmatpush1.msra.mxu0 %v1635
  %1709 = vmatprep.subr.mxu0 0.0
  %1710 = vmatpush1.msra.mxu0 %v1634
  %1711 = vmatprep.subr.mxu0 0.0
  %1712 = vmatpush2.msra.mxu0 0.0
  %1713 = vmatprep.subr.mxu0 0.0
  %1714 = vmatpush2.msra.mxu0 0.0
  %1715 = vmatprep.subr.mxu0 0.0
  %1716 = vmatpush2.msra.mxu0 0.0
  %1717 = vmatprep.subr.mxu0 0.0
  %1718 = vmatpush2.msra.mxu0 0.0
  %1719 = vmatprep.subr.mxu0 0.0
  %1720 = vmatpush2.msra.mxu0 0.0
  %1721 = vmatprep.subr.mxu0 0.0
  %1722 = vmatpush2.msra.mxu0 0.0
  %1723 = vmatprep.subr.mxu0 0.0
  %1724 = vmatpush2.msra.mxu0 0.0
  %1725 = vmatprep.subr.mxu0 0.0
  %1726 = vmatpush2.msra.mxu0 0.0
  %1727 = vmatprep.subr.mxu0 0.0
  %1728 = vmatpush2.msra.mxu0 0.0
  %1729 = vmatprep.subr.mxu0 0.0
  %1730 = vmatpush2.msra.mxu0 0.0
  %1731 = vmatprep.subr.mxu0 0.0
  %1732 = vmatpush2.msra.mxu0 0.0
  %1733 = vmatprep.subr.mxu0 0.0
  %1734 = vmatpush2.msra.mxu0 0.0
  %1735 = vmatprep.subr.mxu0 0.0
  %1736 = vmatpush2.msra.mxu0 0.0
  %1737 = vmatprep.subr.mxu0 0.0
  %1738 = vmatpush2.msra.mxu0 0.0
  %1739 = vmatprep.subr.mxu0 0.0
  %1740 = vmatpush2.msra.mxu0 0.0
  %1741 = vmatprep.subr.mxu0 0.0
  %1742 = vmatpush2.msra.mxu0 0.0
  %1743 = vmatprep.mubr.f32.mxu0 0.0
  %1744 = vmatmul.mubr.f32.gmra.mxu0 %v1667
  %v1745 = vpop.f32.mrf.mxu0
  %v1746 = vadd.f32 %v1648, %v1745
  %v1747 = vpop.f32.mrf.mxu0
  %1748 = vmatprep.mubr.f32.mxu0 0.0
  %1749 = vmatmul.mubr.f32.gmra.mxu0 %v1669
  %v1750 = vpop.f32.mrf.mxu0
  %v1751 = vadd.f32 %v1648, %v1750
  %v1752 = vpop.f32.mrf.mxu0
  %1753 = vmatprep.mubr.f32.mxu0 0.0
  %1754 = vmatmul.mubr.f32.gmra.mxu0 %v1671
  %v1755 = vpop.f32.mrf.mxu0
  %v1756 = vadd.f32 %v1648, %v1755
  %v1757 = vpop.f32.mrf.mxu0
  %1758 = vmatprep.mubr.f32.mxu0 0.0
  %1759 = vmatmul.mubr.f32.gmra.mxu0 %v1673
  %v1760 = vpop.f32.mrf.mxu0
  %v1761 = vadd.f32 %v1648, %v1760
  %v1762 = vpop.f32.mrf.mxu0
  %1763 = vmatprep.mubr.f32.mxu0 0.0
  %1764 = vmatmul.mubr.f32.gmra.mxu0 %v1675
  %v1765 = vpop.f32.mrf.mxu0
  %v1766 = vadd.f32 %v1648, %v1765
  %v1767 = vpop.f32.mrf.mxu0
  %1768 = vmatprep.mubr.f32.mxu0 0.0
  %1769 = vmatmul.mubr.f32.gmra.mxu0 %v1677
  %v1770 = vpop.f32.mrf.mxu0
  %v1771 = vadd.f32 %v1648, %v1770
  %v1772 = vpop.f32.mrf.mxu0
  %1773 = vdwg.mxu0
  %vm1774 = vcmask 15360
  %v1775 = vsel %vm1774, %v1746, -inf
  %1776 = vmax.xlane.f32.xlu0 %v1775
  %v1777 = vpop.xlane.xlu0 %1776
  %v1778 = vsel %vm1774, %v1751, -inf
  %1779 = vmax.xlane.f32.xlu0 %v1778
  %v1780 = vpop.xlane.xlu0 %1779
  %v1781 = vsel %vm1774, %v1756, -inf
  %1782 = vmax.xlane.f32.xlu0 %v1781
  %v1783 = vpop.xlane.xlu0 %1782
  %v1784 = vsel %vm1774, %v1761, -inf
  %1785 = vmax.xlane.f32.xlu0 %v1784
  %v1786 = vpop.xlane.xlu0 %1785
  %v1787 = vsel %vm1774, %v1766, -inf
  %1788 = vmax.xlane.f32.xlu0 %v1787
  %v1789 = vpop.xlane.xlu0 %1788
  %v1790 = vsel %vm1774, %v1771, -inf
  %1791 = vmax.xlane.f32.xlu0 %v1790
  %v1792 = vpop.xlane.xlu0 %1791
  %v1793 = vsub.f32 %v1746, %v1777
  %v1794 = vsub.f32 %v1751, %v1780
  %v1795 = vsub.f32 %v1756, %v1783
  %v1796 = vsub.f32 %v1761, %v1786
  %v1797 = vsub.f32 %v1766, %v1789
  %v1798 = vsub.f32 %v1771, %v1792
  %v1799 = vmul.f32 %v1793, 1.442695
  %v1800 = vpow.pop %v1799
  %v1801 = vmul.f32 %v1794, 1.442695
  %v1802 = vpow.pop %v1801
  %v1803 = vmul.f32 %v1795, 1.442695
  %v1804 = vpow.pop %v1803
  %v1805 = vmul.f32 %v1796, 1.442695
  %v1806 = vpow.pop %v1805
  %v1807 = vmul.f32 %v1797, 1.442695
  %v1808 = vpow.pop %v1807
  %v1809 = vmul.f32 %v1798, 1.442695
  %v1810 = vpow.pop %v1809
  %v1811 = vsel %vm1774, %v1800, 0.0
  %1812 = vadd.xlane.f32.xlu0 %v1811
  %v1813 = vpop.xlane.xlu0 %1812
  %v1814 = vsel %vm1774, %v1802, 0.0
  %1815 = vadd.xlane.f32.xlu0 %v1814
  %v1816 = vpop.xlane.xlu0 %1815
  %v1817 = vsel %vm1774, %v1804, 0.0
  %1818 = vadd.xlane.f32.xlu0 %v1817
  %v1819 = vpop.xlane.xlu0 %1818
  %v1820 = vsel %vm1774, %v1806, 0.0
  %1821 = vadd.xlane.f32.xlu0 %v1820
  %v1822 = vpop.xlane.xlu0 %1821
  %v1823 = vsel %vm1774, %v1808, 0.0
  %1824 = vadd.xlane.f32.xlu0 %v1823
  %v1825 = vpop.xlane.xlu0 %1824
  %v1826 = vsel %vm1774, %v1810, 0.0
  %1827 = vadd.xlane.f32.xlu0 %v1826
  %v1828 = vpop.xlane.xlu0 %1827
  %v1829 = vlog2.pop %v1813
  %v1830 = vmul.f32 %v1829, 0.6931472
  %v1831 = vlog2.pop %v1816
  %v1832 = vmul.f32 %v1831, 0.6931472
  %v1833 = vlog2.pop %v1819
  %v1834 = vmul.f32 %v1833, 0.6931472
  %v1835 = vlog2.pop %v1822
  %v1836 = vmul.f32 %v1835, 0.6931472
  %v1837 = vlog2.pop %v1825
  %v1838 = vmul.f32 %v1837, 0.6931472
  %v1839 = vlog2.pop %v1828
  %v1840 = vmul.f32 %v1839, 0.6931472
  %v1841 = vsub.f32 %v1793, %v1830
  %v1842 = vsub.f32 %v1794, %v1832
  %v1843 = vsub.f32 %v1795, %v1834
  %v1844 = vsub.f32 %v1796, %v1836
  %v1845 = vsub.f32 %v1797, %v1838
  %v1846 = vsub.f32 %v1798, %v1840
  %1847 = vst.msk [vmem:[%s7] sm:$0xff] %vm1774, %v1841
  %1848 = vst.msk [vmem:[%s7 + $0x8] sm:$0xff] %vm1774, %v1842
  %1849 = vst.msk [vmem:[%s7 + $0x10] sm:$0xff] %vm1774, %v1843
  %1850 = vst.msk [vmem:[%s7 + $0x18] sm:$0xff] %vm1774, %v1844
  %1851 = vst.msk [vmem:[%s7 + $0x20] sm:$0xff] %vm1774, %v1845
  %1852 = vst.msk [vmem:[%s7 + $0x28] sm:$0xff] %vm1774, %v1846
  // Predicated region
  $region30: #{att_model_forward.1} parent=0 // pred_check
    _
  $region31: #{att_model_forward.1} parent=0 // pred_check_branch
    %1854 = sbr.rel (0) target = $region33
  $region32: #{att_model_forward.1} parent=0 // pred_region
    _
  $region33: #{att_model_forward.1} parent=0 // pred_fallthru
    _
  // Predicated region
  $region34: #{att_model_forward.1} parent=0 // pred_check
    _
  $region35: #{att_model_forward.1} parent=0 // pred_check_branch
    %1856 = sbr.rel (0) target = $region37
  $region36: #{att_model_forward.1} parent=0 // pred_region
    _
  $region37: #{att_model_forward.1} parent=0 // pred_fallthru
    _

</llo_original>
